<compile_context>
chip_gen: v5e
topology: v5e:2x2
jax: 0.10.0
libtpu: 0.0.40
codegen_flags: <defaults>
</compile_context>

<pallas_src>
import jax
import jax.numpy as jnp
from jax.experimental import pallas as pl
from jax.experimental.pallas import tpu as pltpu


def _gap_conv_kernel(x_ref, w_ref, b_ref, o_ref):
    # x_ref: (1, Cin, HW)   natural NCHW slab for one batch element
    # w_ref: (Cout, Cin)    natural Conv2d weight reshape (VMEM-resident)
    # b_ref: (1, Cout)
    # o_ref: (1, Cout)
    hw = x_ref.shape[-1]
    inv_hw = 1.0 / hw  # trace-time constant

    # MXU matmul with Cin contracted in its natural orientation (no transposes).
    y = jnp.dot(w_ref[...], x_ref[0], preferred_element_type=jnp.float32)  # (Cout, HW)

    # Global average pool: XLU lane-reduce over HW (only 12 vregs), then a
    # single scalar multiply folds in the 1/HW mean scale.
    pooled = jnp.sum(y, axis=-1) * inv_hw                                  # (Cout,)

    o_ref[...] = (pooled[None, :] + b_ref[...]).astype(o_ref.dtype)


def gap_conv1x1(x_nchw, weight, bias):
    """x_nchw: (N, Cin, H, W); weight: (Cout, Cin, 1, 1); bias: (Cout,)."""
    n, cin, h, w = x_nchw.shape
    cout = weight.shape[0]
    hw = h * w

    # All glue below is free (contiguous reshapes only, no transposes).
    x_flat = x_nchw.reshape(n, cin, hw)          # (N, Cin, HW)
    w2d = weight.reshape(cout, cin)              # (Cout, Cin)
    b_row = bias.reshape(1, cout)                # (1, Cout)

    itemsize = jnp.dtype(x_nchw.dtype).itemsize
    cost = pl.CostEstimate(
        flops=2 * n * cout * cin * hw + n * cout * hw,
        transcendentals=0,
        bytes_accessed=(n * cin * hw + cout * cin + cout + n * cout) * itemsize,
    )

    out = pl.pallas_call(
        _gap_conv_kernel,
        out_shape=jax.ShapeDtypeStruct((n, cout), x_nchw.dtype),
        grid=(n,),
        in_specs=[
            pl.BlockSpec((1, cin, hw), lambda i: (i, 0, 0)),   # per-batch slab
            pl.BlockSpec((cout, cin), lambda i: (0, 0)),       # weight (resident)
            pl.BlockSpec((1, cout), lambda i: (0, 0)),         # bias   (resident)
        ],
        out_specs=pl.BlockSpec((1, cout), lambda i: (i, 0)),
        compiler_params=pltpu.CompilerParams(
            dimension_semantics=("parallel",),
        ),
        cost_estimate=cost,
    )(x_flat, w2d, b_row)

    # Back to NCHW conv output: (N, Cout, 1, 1)
    return out.reshape(n, cout, 1, 1)


if __name__ == "__main__":
    key = jax.random.PRNGKey(0)
    kx, kw, kb = jax.random.split(key, 3)

    # Shapes implied by the module's forward: x610 is [1, 2304, 7, 7],
    # Conv2d(2304, 96, 1) parameters.
    N, CIN, H, W, COUT = 1, 2304, 7, 7, 96

    x = jax.random.normal(kx, (N, CIN, H, W), dtype=jnp.float32)
    weight = jax.random.normal(kw, (COUT, CIN, 1, 1), dtype=jnp.float32) * 0.02
    bias = jax.random.normal(kb, (COUT,), dtype=jnp.float32) * 0.01

    y = gap_conv1x1(x, weight, bias)
    jax.block_until_ready(y)

    # Sanity check against a plain-JAX reference of the module's math.
    ref = (
        jnp.einsum("nc,oc->no", x.mean(axis=(2, 3)), weight.reshape(COUT, CIN))
        + bias[None, :]
    ).reshape(N, COUT, 1, 1)
    assert y.shape == (N, COUT, 1, 1)
    assert jnp.allclose(y, ref, atol=1e-3, rtol=1e-3)

    print("KERNEL_OK")
</pallas_src>

<mosaic_0001>
module attributes {stable_mosaic.version = 11 : i64} {
  func.func @_gap_conv_kernel(%arg0: i32, %arg1: memref<1x2304x49xf32, #tpu.memory_space<vmem>>, %arg2: memref<96x2304xf32, #tpu.memory_space<vmem>>, %arg3: memref<1x96xf32, #tpu.memory_space<vmem>>, %arg4: memref<1x96xf32, #tpu.memory_space<vmem>>) attributes {dimension_semantics = [#tpu.dimension_semantics<parallel>], iteration_bounds = array<i64: 1>, scalar_prefetch = 0 : i64, scratch_operands = 0 : i64, tpu.core_type = #tpu.core_type<tc>, window_params = [{transform_indices = @transform_0, window_bounds = array<i64: 1, 2304, 49>}, {pipeline_mode = #tpu.pipeline_mode<synchronous>, transform_indices = @transform_1, window_bounds = array<i64: 96, 2304>}, {pipeline_mode = #tpu.pipeline_mode<synchronous>, transform_indices = @transform_2, window_bounds = array<i64: 1, 96>}, {transform_indices = @transform_3, window_bounds = array<i64: 1, 96>}]} {
    %c0 = arith.constant 0 : index
    %c0_0 = arith.constant 0 : index
    %0 = vector.load %arg2[%c0, %c0_0] : memref<96x2304xf32, #tpu.memory_space<vmem>>, vector<96x2304xf32>
    %c0_1 = arith.constant 0 : index
    %c0_2 = arith.constant 0 : index
    %c0_3 = arith.constant 0 : index
    %1 = vector.load %arg1[%c0_1, %c0_2, %c0_3] : memref<1x2304x49xf32, #tpu.memory_space<vmem>>, vector<1x2304x49xf32>
    %2 = vector.shape_cast %1 : vector<1x2304x49xf32> to vector<2304x49xf32>
    %cst = arith.constant dense<0.000000e+00> : vector<96x49xf32>
    %3 = tpu.matmul %0, %2, %cst {dimension_numbers = #tpu.dot_dimension_numbers<[1], [0], [0], [1], [0, 0, 1, 1], [], []>} : vector<96x2304xf32>, vector<2304x49xf32>, vector<96x49xf32> -> vector<96x49xf32>
    %cst_4 = arith.constant dense<0.000000e+00> : vector<96xf32>
    %4 = vector.multi_reduction <add>, %3, %cst_4 [1] : vector<96x49xf32> to vector<96xf32>
    %cst_5 = arith.constant 0.0204081628 : f32
    %5 = vector.broadcast %cst_5 : f32 to vector<96xf32>
    %6 = arith.mulf %4, %5 : vector<96xf32>
    %7 = vector.shape_cast %6 : vector<96xf32> to vector<1x96xf32>
    %c0_6 = arith.constant 0 : index
    %c0_7 = arith.constant 0 : index
    %8 = vector.load %arg3[%c0_6, %c0_7] : memref<1x96xf32, #tpu.memory_space<vmem>>, vector<1x96xf32>
    %9 = arith.addf %7, %8 : vector<1x96xf32>
    %c0_8 = arith.constant 0 : index
    %c0_9 = arith.constant 0 : index
    %10 = vector.load %arg4[%c0_8, %c0_9] : memref<1x96xf32, #tpu.memory_space<vmem>>, vector<1x96xf32>
    tpu.vector_store %arg4[%c0_8, %c0_9], %9 {strides = array<i32>} : memref<1x96xf32, #tpu.memory_space<vmem>>, vector<1x96xf32>,
    return
  }
  func.func @transform_0(%arg0: i32) -> (i32, i32, i32) {
    %c0_i32 = arith.constant 0 : i32
    %c0_i32_0 = arith.constant 0 : i32
    %c0_i32_1 = arith.constant 0 : i32
    return %arg0, %c0_i32, %c0_i32_0 : i32, i32, i32
  }
  func.func @transform_1(%arg0: i32) -> (i32, i32) {
    %c0_i32 = arith.constant 0 : i32
    %c0_i32_0 = arith.constant 0 : i32
    %c0_i32_1 = arith.constant 0 : i32
    return %c0_i32, %c0_i32_0 : i32, i32
  }
  func.func @transform_2(%arg0: i32) -> (i32, i32) {
    %c0_i32 = arith.constant 0 : i32
    %c0_i32_0 = arith.constant 0 : i32
    %c0_i32_1 = arith.constant 0 : i32
    return %c0_i32, %c0_i32_0 : i32, i32
  }
  func.func @transform_3(%arg0: i32) -> (i32, i32) {
    %c0_i32 = arith.constant 0 : i32
    %c0_i32_0 = arith.constant 0 : i32
    return %arg0, %c0_i32 : i32, i32
  }
}

</mosaic_0001>

<llo_original>
// kernel: tpu_custom_call.1
$region0: #{tpu_custom_call.1}
  #allocation0 [shape = 'u32[]', space=smem, size = 0x4, offset = 0x4, fixed_abs, tag = 'smem constant byte address 0x4 - core index']
  #allocation1 [shape = 'u32[72,128]{1,0:T(1,128)}', space=vmem, size = 0x9000, scoped, tag = 'internal scratch']
  %s0 = inlined_call_operand.vmem [shape: f32[1,2304,49], index: 0, kind: input, shape index: {}]
  %s1 = inlined_call_operand.vmem [shape: f32[96,2304], index: 1, kind: input, shape index: {}]
  %s2 = inlined_call_operand.vmem [shape: f32[1,96], index: 2, kind: input, shape index: {}]
  %s3 = inlined_call_operand.hbm [shape: f32[1,96], index: 3, kind: output, shape index: {}]
  %s4 = sld [smem:[#allocation0]]
  $region22: #{tpu_custom_call.1} parent=0
    _
  %s6 = ssub.s32 1, %s4
  %s7 = scalar_select 0, %s6, %s4
  $region1: #{tpu_custom_call.1} parent=0
    #allocation2 [shape = 'u8[512]{0}', space=vmem, size = 0x400, scoped, tag = 'output window, operand 0, single buffered']
    #allocation3 [shape = 's32[1]{0}', space=sflag, size = 0x4, scoped, tag = 'scoped memory for tpu_custom_call.1']
    %8 = vsyncpa [#allocation3], 0
    // Predicated region
    $region2: #{tpu_custom_call.1} parent=1 // pred_check
      _
    $region3: #{tpu_custom_call.1} parent=1 // pred_check_branch
      %10 = sbr.rel (0) target = $region5
    $region4: #{tpu_custom_call.1} parent=1 // pred_region
      _
    $region5: #{tpu_custom_call.1} parent=1 // pred_fallthru
      _
    // Predicated region
    $region6: #{tpu_custom_call.1} parent=1 // pred_check
      _
    $region7: #{tpu_custom_call.1} parent=1 // pred_check_branch
      %12 = sbr.rel (0) target = $region9
    $region8: #{tpu_custom_call.1} parent=1 // pred_region
      _
    $region9: #{tpu_custom_call.1} parent=1 // pred_fallthru
      _
    // Predicated region
    $region10: #{tpu_custom_call.1} parent=1 // pred_check
      _
    $region11: #{tpu_custom_call.1} parent=1 // pred_check_branch
      %14 = sbr.rel (0) target = $region13
    $region12: #{tpu_custom_call.1} parent=1 // pred_region
      _
    $region13: #{tpu_custom_call.1} parent=1 // pred_fallthru
      _
    %v15 = vld [vmem:[%s1] sm:$0xff]
    %v16 = vld [vmem:[%s1 + $0x8] sm:$0xff]
    %v17 = vld [vmem:[%s1 + $0x10] sm:$0xff]
    %v18 = vld [vmem:[%s1 + $0x18] sm:$0xff]
    %v19 = vld [vmem:[%s1 + $0x20] sm:$0xff]
    %v20 = vld [vmem:[%s1 + $0x28] sm:$0xff]
    %v21 = vld [vmem:[%s1 + $0x30] sm:$0xff]
    %v22 = vld [vmem:[%s1 + $0x38] sm:$0xff]
    %v23 = vld [vmem:[%s1 + $0x40] sm:$0xff]
    %v24 = vld [vmem:[%s1 + $0x48] sm:$0xff]
    %v25 = vld [vmem:[%s1 + $0x50] sm:$0xff]
    %v26 = vld [vmem:[%s1 + $0x58] sm:$0xff]
    %v27 = vld [vmem:[%s1 + $0x60] sm:$0xff]
    %v28 = vld [vmem:[%s1 + $0x68] sm:$0xff]
    %v29 = vld [vmem:[%s1 + $0x70] sm:$0xff]
    %v30 = vld [vmem:[%s1 + $0x78] sm:$0xff]
    %v31 = vld [vmem:[%s1 + $0x80] sm:$0xff]
    %v32 = vld [vmem:[%s1 + $0x88] sm:$0xff]
    %v33 = vld [vmem:[%s1 + $0x90] sm:$0xff]
    %v34 = vld [vmem:[%s1 + $0x98] sm:$0xff]
    %v35 = vld [vmem:[%s1 + $0xa0] sm:$0xff]
    %v36 = vld [vmem:[%s1 + $0xa8] sm:$0xff]
    %v37 = vld [vmem:[%s1 + $0xb0] sm:$0xff]
    %v38 = vld [vmem:[%s1 + $0xb8] sm:$0xff]
    %v39 = vld [vmem:[%s1 + $0xc0] sm:$0xff]
    %v40 = vld [vmem:[%s1 + $0xc8] sm:$0xff]
    %v41 = vld [vmem:[%s1 + $0xd0] sm:$0xff]
    %v42 = vld [vmem:[%s1 + $0xd8] sm:$0xff]
    %v43 = vld [vmem:[%s1 + $0xe0] sm:$0xff]
    %v44 = vld [vmem:[%s1 + $0xe8] sm:$0xff]
    %v45 = vld [vmem:[%s1 + $0xf0] sm:$0xff]
    %v46 = vld [vmem:[%s1 + $0xf8] sm:$0xff]
    %v47 = vld [vmem:[%s1 + $0x100] sm:$0xff]
    %v48 = vld [vmem:[%s1 + $0x108] sm:$0xff]
    %v49 = vld [vmem:[%s1 + $0x110] sm:$0xff]
    %v50 = vld [vmem:[%s1 + $0x118] sm:$0xff]
    %v51 = vld [vmem:[%s1 + $0x120] sm:$0xff]
    %v52 = vld [vmem:[%s1 + $0x128] sm:$0xff]
    %v53 = vld [vmem:[%s1 + $0x130] sm:$0xff]
    %v54 = vld [vmem:[%s1 + $0x138] sm:$0xff]
    %v55 = vld [vmem:[%s1 + $0x140] sm:$0xff]
    %v56 = vld [vmem:[%s1 + $0x148] sm:$0xff]
    %v57 = vld [vmem:[%s1 + $0x150] sm:$0xff]
    %v58 = vld [vmem:[%s1 + $0x158] sm:$0xff]
    %v59 = vld [vmem:[%s1 + $0x160] sm:$0xff]
    %v60 = vld [vmem:[%s1 + $0x168] sm:$0xff]
    %v61 = vld [vmem:[%s1 + $0x170] sm:$0xff]
    %v62 = vld [vmem:[%s1 + $0x178] sm:$0xff]
    %v63 = vld [vmem:[%s1 + $0x180] sm:$0xff]
    %v64 = vld [vmem:[%s1 + $0x188] sm:$0xff]
    %v65 = vld [vmem:[%s1 + $0x190] sm:$0xff]
    %v66 = vld [vmem:[%s1 + $0x198] sm:$0xff]
    %v67 = vld [vmem:[%s1 + $0x1a0] sm:$0xff]
    %v68 = vld [vmem:[%s1 + $0x1a8] sm:$0xff]
    %v69 = vld [vmem:[%s1 + $0x1b0] sm:$0xff]
    %v70 = vld [vmem:[%s1 + $0x1b8] sm:$0xff]
    %v71 = vld [vmem:[%s1 + $0x1c0] sm:$0xff]
    %v72 = vld [vmem:[%s1 + $0x1c8] sm:$0xff]
    %v73 = vld [vmem:[%s1 + $0x1d0] sm:$0xff]
    %v74 = vld [vmem:[%s1 + $0x1d8] sm:$0xff]
    %v75 = vld [vmem:[%s1 + $0x1e0] sm:$0xff]
    %v76 = vld [vmem:[%s1 + $0x1e8] sm:$0xff]
    %v77 = vld [vmem:[%s1 + $0x1f0] sm:$0xff]
    %v78 = vld [vmem:[%s1 + $0x1f8] sm:$0xff]
    %v79 = vld [vmem:[%s1 + $0x200] sm:$0xff]
    %v80 = vld [vmem:[%s1 + $0x208] sm:$0xff]
    %v81 = vld [vmem:[%s1 + $0x210] sm:$0xff]
    %v82 = vld [vmem:[%s1 + $0x218] sm:$0xff]
    %v83 = vld [vmem:[%s1 + $0x220] sm:$0xff]
    %v84 = vld [vmem:[%s1 + $0x228] sm:$0xff]
    %v85 = vld [vmem:[%s1 + $0x230] sm:$0xff]
    %v86 = vld [vmem:[%s1 + $0x238] sm:$0xff]
    %v87 = vld [vmem:[%s1 + $0x240] sm:$0xff]
    %v88 = vld [vmem:[%s1 + $0x248] sm:$0xff]
    %v89 = vld [vmem:[%s1 + $0x250] sm:$0xff]
    %v90 = vld [vmem:[%s1 + $0x258] sm:$0xff]
    %v91 = vld [vmem:[%s1 + $0x260] sm:$0xff]
    %v92 = vld [vmem:[%s1 + $0x268] sm:$0xff]
    %v93 = vld [vmem:[%s1 + $0x270] sm:$0xff]
    %v94 = vld [vmem:[%s1 + $0x278] sm:$0xff]
    %v95 = vld [vmem:[%s1 + $0x280] sm:$0xff]
    %v96 = vld [vmem:[%s1 + $0x288] sm:$0xff]
    %v97 = vld [vmem:[%s1 + $0x290] sm:$0xff]
    %v98 = vld [vmem:[%s1 + $0x298] sm:$0xff]
    %v99 = vld [vmem:[%s1 + $0x2a0] sm:$0xff]
    %v100 = vld [vmem:[%s1 + $0x2a8] sm:$0xff]
    %v101 = vld [vmem:[%s1 + $0x2b0] sm:$0xff]
    %v102 = vld [vmem:[%s1 + $0x2b8] sm:$0xff]
    %v103 = vld [vmem:[%s1 + $0x2c0] sm:$0xff]
    %v104 = vld [vmem:[%s1 + $0x2c8] sm:$0xff]
    %v105 = vld [vmem:[%s1 + $0x2d0] sm:$0xff]
    %v106 = vld [vmem:[%s1 + $0x2d8] sm:$0xff]
    %v107 = vld [vmem:[%s1 + $0x2e0] sm:$0xff]
    %v108 = vld [vmem:[%s1 + $0x2e8] sm:$0xff]
    %v109 = vld [vmem:[%s1 + $0x2f0] sm:$0xff]
    %v110 = vld [vmem:[%s1 + $0x2f8] sm:$0xff]
    %v111 = vld [vmem:[%s1 + $0x300] sm:$0xff]
    %v112 = vld [vmem:[%s1 + $0x308] sm:$0xff]
    %v113 = vld [vmem:[%s1 + $0x310] sm:$0xff]
    %v114 = vld [vmem:[%s1 + $0x318] sm:$0xff]
    %v115 = vld [vmem:[%s1 + $0x320] sm:$0xff]
    %v116 = vld [vmem:[%s1 + $0x328] sm:$0xff]
    %v117 = vld [vmem:[%s1 + $0x330] sm:$0xff]
    %v118 = vld [vmem:[%s1 + $0x338] sm:$0xff]
    %v119 = vld [vmem:[%s1 + $0x340] sm:$0xff]
    %v120 = vld [vmem:[%s1 + $0x348] sm:$0xff]
    %v121 = vld [vmem:[%s1 + $0x350] sm:$0xff]
    %v122 = vld [vmem:[%s1 + $0x358] sm:$0xff]
    %v123 = vld [vmem:[%s1 + $0x360] sm:$0xff]
    %v124 = vld [vmem:[%s1 + $0x368] sm:$0xff]
    %v125 = vld [vmem:[%s1 + $0x370] sm:$0xff]
    %v126 = vld [vmem:[%s1 + $0x378] sm:$0xff]
    %v127 = vld [vmem:[%s1 + $0x380] sm:$0xff]
    %v128 = vld [vmem:[%s1 + $0x388] sm:$0xff]
    %v129 = vld [vmem:[%s1 + $0x390] sm:$0xff]
    %v130 = vld [vmem:[%s1 + $0x398] sm:$0xff]
    %v131 = vld [vmem:[%s1 + $0x3a0] sm:$0xff]
    %v132 = vld [vmem:[%s1 + $0x3a8] sm:$0xff]
    %v133 = vld [vmem:[%s1 + $0x3b0] sm:$0xff]
    %v134 = vld [vmem:[%s1 + $0x3b8] sm:$0xff]
    %v135 = vld [vmem:[%s1 + $0x3c0] sm:$0xff]
    %v136 = vld [vmem:[%s1 + $0x3c8] sm:$0xff]
    %v137 = vld [vmem:[%s1 + $0x3d0] sm:$0xff]
    %v138 = vld [vmem:[%s1 + $0x3d8] sm:$0xff]
    %v139 = vld [vmem:[%s1 + $0x3e0] sm:$0xff]
    %v140 = vld [vmem:[%s1 + $0x3e8] sm:$0xff]
    %v141 = vld [vmem:[%s1 + $0x3f0] sm:$0xff]
    %v142 = vld [vmem:[%s1 + $0x3f8] sm:$0xff]
    %v143 = vld [vmem:[%s1 + $0x400] sm:$0xff]
    %v144 = vld [vmem:[%s1 + $0x408] sm:$0xff]
    %v145 = vld [vmem:[%s1 + $0x410] sm:$0xff]
    %v146 = vld [vmem:[%s1 + $0x418] sm:$0xff]
    %v147 = vld [vmem:[%s1 + $0x420] sm:$0xff]
    %v148 = vld [vmem:[%s1 + $0x428] sm:$0xff]
    %v149 = vld [vmem:[%s1 + $0x430] sm:$0xff]
    %v150 = vld [vmem:[%s1 + $0x438] sm:$0xff]
    %v151 = vld [vmem:[%s1 + $0x440] sm:$0xff]
    %v152 = vld [vmem:[%s1 + $0x448] sm:$0xff]
    %v153 = vld [vmem:[%s1 + $0x450] sm:$0xff]
    %v154 = vld [vmem:[%s1 + $0x458] sm:$0xff]
    %v155 = vld [vmem:[%s1 + $0x460] sm:$0xff]
    %v156 = vld [vmem:[%s1 + $0x468] sm:$0xff]
    %v157 = vld [vmem:[%s1 + $0x470] sm:$0xff]
    %v158 = vld [vmem:[%s1 + $0x478] sm:$0xff]
    %v159 = vld [vmem:[%s1 + $0x480] sm:$0xff]
    %v160 = vld [vmem:[%s1 + $0x488] sm:$0xff]
    %v161 = vld [vmem:[%s1 + $0x490] sm:$0xff]
    %v162 = vld [vmem:[%s1 + $0x498] sm:$0xff]
    %v163 = vld [vmem:[%s1 + $0x4a0] sm:$0xff]
    %v164 = vld [vmem:[%s1 + $0x4a8] sm:$0xff]
    %v165 = vld [vmem:[%s1 + $0x4b0] sm:$0xff]
    %v166 = vld [vmem:[%s1 + $0x4b8] sm:$0xff]
    %v167 = vld [vmem:[%s1 + $0x4c0] sm:$0xff]
    %v168 = vld [vmem:[%s1 + $0x4c8] sm:$0xff]
    %v169 = vld [vmem:[%s1 + $0x4d0] sm:$0xff]
    %v170 = vld [vmem:[%s1 + $0x4d8] sm:$0xff]
    %v171 = vld [vmem:[%s1 + $0x4e0] sm:$0xff]
    %v172 = vld [vmem:[%s1 + $0x4e8] sm:$0xff]
    %v173 = vld [vmem:[%s1 + $0x4f0] sm:$0xff]
    %v174 = vld [vmem:[%s1 + $0x4f8] sm:$0xff]
    %v175 = vld [vmem:[%s1 + $0x500] sm:$0xff]
    %v176 = vld [vmem:[%s1 + $0x508] sm:$0xff]
    %v177 = vld [vmem:[%s1 + $0x510] sm:$0xff]
    %v178 = vld [vmem:[%s1 + $0x518] sm:$0xff]
    %v179 = vld [vmem:[%s1 + $0x520] sm:$0xff]
    %v180 = vld [vmem:[%s1 + $0x528] sm:$0xff]
    %v181 = vld [vmem:[%s1 + $0x530] sm:$0xff]
    %v182 = vld [vmem:[%s1 + $0x538] sm:$0xff]
    %v183 = vld [vmem:[%s1 + $0x540] sm:$0xff]
    %v184 = vld [vmem:[%s1 + $0x548] sm:$0xff]
    %v185 = vld [vmem:[%s1 + $0x550] sm:$0xff]
    %v186 = vld [vmem:[%s1 + $0x558] sm:$0xff]
    %v187 = vld [vmem:[%s1 + $0x560] sm:$0xff]
    %v188 = vld [vmem:[%s1 + $0x568] sm:$0xff]
    %v189 = vld [vmem:[%s1 + $0x570] sm:$0xff]
    %v190 = vld [vmem:[%s1 + $0x578] sm:$0xff]
    %v191 = vld [vmem:[%s1 + $0x580] sm:$0xff]
    %v192 = vld [vmem:[%s1 + $0x588] sm:$0xff]
    %v193 = vld [vmem:[%s1 + $0x590] sm:$0xff]
    %v194 = vld [vmem:[%s1 + $0x598] sm:$0xff]
    %v195 = vld [vmem:[%s1 + $0x5a0] sm:$0xff]
    %v196 = vld [vmem:[%s1 + $0x5a8] sm:$0xff]
    %v197 = vld [vmem:[%s1 + $0x5b0] sm:$0xff]
    %v198 = vld [vmem:[%s1 + $0x5b8] sm:$0xff]
    %v199 = vld [vmem:[%s1 + $0x5c0] sm:$0xff]
    %v200 = vld [vmem:[%s1 + $0x5c8] sm:$0xff]
    %v201 = vld [vmem:[%s1 + $0x5d0] sm:$0xff]
    %v202 = vld [vmem:[%s1 + $0x5d8] sm:$0xff]
    %v203 = vld [vmem:[%s1 + $0x5e0] sm:$0xff]
    %v204 = vld [vmem:[%s1 + $0x5e8] sm:$0xff]
    %v205 = vld [vmem:[%s1 + $0x5f0] sm:$0xff]
    %v206 = vld [vmem:[%s1 + $0x5f8] sm:$0xff]
    %v207 = vld [vmem:[%s1 + $0x600] sm:$0xff]
    %v208 = vld [vmem:[%s1 + $0x608] sm:$0xff]
    %v209 = vld [vmem:[%s1 + $0x610] sm:$0xff]
    %v210 = vld [vmem:[%s1 + $0x618] sm:$0xff]
    %v211 = vld [vmem:[%s1 + $0x620] sm:$0xff]
    %v212 = vld [vmem:[%s1 + $0x628] sm:$0xff]
    %v213 = vld [vmem:[%s1 + $0x630] sm:$0xff]
    %v214 = vld [vmem:[%s1 + $0x638] sm:$0xff]
    %v215 = vld [vmem:[%s1 + $0x640] sm:$0xff]
    %v216 = vld [vmem:[%s1 + $0x648] sm:$0xff]
    %v217 = vld [vmem:[%s1 + $0x650] sm:$0xff]
    %v218 = vld [vmem:[%s1 + $0x658] sm:$0xff]
    %v219 = vld [vmem:[%s1 + $0x660] sm:$0xff]
    %v220 = vld [vmem:[%s1 + $0x668] sm:$0xff]
    %v221 = vld [vmem:[%s1 + $0x670] sm:$0xff]
    %v222 = vld [vmem:[%s1 + $0x678] sm:$0xff]
    %v223 = vld [vmem:[%s1 + $0x680] sm:$0xff]
    %v224 = vld [vmem:[%s1 + $0x688] sm:$0xff]
    %v225 = vld [vmem:[%s1 + $0x690] sm:$0xff]
    %v226 = vld [vmem:[%s1 + $0x698] sm:$0xff]
    %v227 = vld [vmem:[%s1 + $0x6a0] sm:$0xff]
    %v228 = vld [vmem:[%s1 + $0x6a8] sm:$0xff]
    %v229 = vld [vmem:[%s1 + $0x6b0] sm:$0xff]
    %v230 = vld [vmem:[%s1 + $0x6b8] sm:$0xff]
    %v231 = vld [vmem:[%s0] sm:$0xff]
    %v232 = vld [vmem:[%s0 + $0x8] sm:$0xff]
    %v233 = vld [vmem:[%s0 + $0x10] sm:$0xff]
    %v234 = vld [vmem:[%s0 + $0x18] sm:$0xff]
    %v235 = vld [vmem:[%s0 + $0x20] sm:$0xff]
    %v236 = vld [vmem:[%s0 + $0x28] sm:$0xff]
    %v237 = vld [vmem:[%s0 + $0x30] sm:$0xff]
    %v238 = vld [vmem:[%s0 + $0x38] sm:$0xff]
    %v239 = vld [vmem:[%s0 + $0x40] sm:$0xff]
    %v240 = vld [vmem:[%s0 + $0x48] sm:$0xff]
    %v241 = vld [vmem:[%s0 + $0x50] sm:$0xff]
    %v242 = vld [vmem:[%s0 + $0x58] sm:$0xff]
    %v243 = vld [vmem:[%s0 + $0x60] sm:$0xff]
    %v244 = vld [vmem:[%s0 + $0x68] sm:$0xff]
    %v245 = vld [vmem:[%s0 + $0x70] sm:$0xff]
    %v246 = vld [vmem:[%s0 + $0x78] sm:$0xff]
    %v247 = vld [vmem:[%s0 + $0x80] sm:$0xff]
    %v248 = vld [vmem:[%s0 + $0x88] sm:$0xff]
    %v249 = vld [vmem:[%s0 + $0x90] sm:$0xff]
    %v250 = vld [vmem:[%s0 + $0x98] sm:$0xff]
    %v251 = vld [vmem:[%s0 + $0xa0] sm:$0xff]
    %v252 = vld [vmem:[%s0 + $0xa8] sm:$0xff]
    %v253 = vld [vmem:[%s0 + $0xb0] sm:$0xff]
    %v254 = vld [vmem:[%s0 + $0xb8] sm:$0xff]
    %v255 = vld [vmem:[%s0 + $0xc0] sm:$0xff]
    %v256 = vld [vmem:[%s0 + $0xc8] sm:$0xff]
    %v257 = vld [vmem:[%s0 + $0xd0] sm:$0xff]
    %v258 = vld [vmem:[%s0 + $0xd8] sm:$0xff]
    %v259 = vld [vmem:[%s0 + $0xe0] sm:$0xff]
    %v260 = vld [vmem:[%s0 + $0xe8] sm:$0xff]
    %v261 = vld [vmem:[%s0 + $0xf0] sm:$0xff]
    %v262 = vld [vmem:[%s0 + $0xf8] sm:$0xff]
    %v263 = vld [vmem:[%s0 + $0x100] sm:$0xff]
    %v264 = vld [vmem:[%s0 + $0x108] sm:$0xff]
    %v265 = vld [vmem:[%s0 + $0x110] sm:$0xff]
    %v266 = vld [vmem:[%s0 + $0x118] sm:$0xff]
    %v267 = vld [vmem:[%s0 + $0x120] sm:$0xff]
    %v268 = vld [vmem:[%s0 + $0x128] sm:$0xff]
    %v269 = vld [vmem:[%s0 + $0x130] sm:$0xff]
    %v270 = vld [vmem:[%s0 + $0x138] sm:$0xff]
    %v271 = vld [vmem:[%s0 + $0x140] sm:$0xff]
    %v272 = vld [vmem:[%s0 + $0x148] sm:$0xff]
    %v273 = vld [vmem:[%s0 + $0x150] sm:$0xff]
    %v274 = vld [vmem:[%s0 + $0x158] sm:$0xff]
    %v275 = vld [vmem:[%s0 + $0x160] sm:$0xff]
    %v276 = vld [vmem:[%s0 + $0x168] sm:$0xff]
    %v277 = vld [vmem:[%s0 + $0x170] sm:$0xff]
    %v278 = vld [vmem:[%s0 + $0x178] sm:$0xff]
    %v279 = vld [vmem:[%s0 + $0x180] sm:$0xff]
    %v280 = vld [vmem:[%s0 + $0x188] sm:$0xff]
    %v281 = vld [vmem:[%s0 + $0x190] sm:$0xff]
    %v282 = vld [vmem:[%s0 + $0x198] sm:$0xff]
    %v283 = vld [vmem:[%s0 + $0x1a0] sm:$0xff]
    %v284 = vld [vmem:[%s0 + $0x1a8] sm:$0xff]
    %v285 = vld [vmem:[%s0 + $0x1b0] sm:$0xff]
    %v286 = vld [vmem:[%s0 + $0x1b8] sm:$0xff]
    %v287 = vld [vmem:[%s0 + $0x1c0] sm:$0xff]
    %v288 = vld [vmem:[%s0 + $0x1c8] sm:$0xff]
    %v289 = vld [vmem:[%s0 + $0x1d0] sm:$0xff]
    %v290 = vld [vmem:[%s0 + $0x1d8] sm:$0xff]
    %v291 = vld [vmem:[%s0 + $0x1e0] sm:$0xff]
    %v292 = vld [vmem:[%s0 + $0x1e8] sm:$0xff]
    %v293 = vld [vmem:[%s0 + $0x1f0] sm:$0xff]
    %v294 = vld [vmem:[%s0 + $0x1f8] sm:$0xff]
    %v295 = vld [vmem:[%s0 + $0x200] sm:$0xff]
    %v296 = vld [vmem:[%s0 + $0x208] sm:$0xff]
    %v297 = vld [vmem:[%s0 + $0x210] sm:$0xff]
    %v298 = vld [vmem:[%s0 + $0x218] sm:$0xff]
    %v299 = vld [vmem:[%s0 + $0x220] sm:$0xff]
    %v300 = vld [vmem:[%s0 + $0x228] sm:$0xff]
    %v301 = vld [vmem:[%s0 + $0x230] sm:$0xff]
    %v302 = vld [vmem:[%s0 + $0x238] sm:$0xff]
    %v303 = vld [vmem:[%s0 + $0x240] sm:$0xff]
    %v304 = vld [vmem:[%s0 + $0x248] sm:$0xff]
    %v305 = vld [vmem:[%s0 + $0x250] sm:$0xff]
    %v306 = vld [vmem:[%s0 + $0x258] sm:$0xff]
    %v307 = vld [vmem:[%s0 + $0x260] sm:$0xff]
    %v308 = vld [vmem:[%s0 + $0x268] sm:$0xff]
    %v309 = vld [vmem:[%s0 + $0x270] sm:$0xff]
    %v310 = vld [vmem:[%s0 + $0x278] sm:$0xff]
    %v311 = vld [vmem:[%s0 + $0x280] sm:$0xff]
    %v312 = vld [vmem:[%s0 + $0x288] sm:$0xff]
    %v313 = vld [vmem:[%s0 + $0x290] sm:$0xff]
    %v314 = vld [vmem:[%s0 + $0x298] sm:$0xff]
    %v315 = vld [vmem:[%s0 + $0x2a0] sm:$0xff]
    %v316 = vld [vmem:[%s0 + $0x2a8] sm:$0xff]
    %v317 = vld [vmem:[%s0 + $0x2b0] sm:$0xff]
    %v318 = vld [vmem:[%s0 + $0x2b8] sm:$0xff]
    %v319 = vld [vmem:[%s0 + $0x2c0] sm:$0xff]
    %v320 = vld [vmem:[%s0 + $0x2c8] sm:$0xff]
    %v321 = vld [vmem:[%s0 + $0x2d0] sm:$0xff]
    %v322 = vld [vmem:[%s0 + $0x2d8] sm:$0xff]
    %v323 = vld [vmem:[%s0 + $0x2e0] sm:$0xff]
    %v324 = vld [vmem:[%s0 + $0x2e8] sm:$0xff]
    %v325 = vld [vmem:[%s0 + $0x2f0] sm:$0xff]
    %v326 = vld [vmem:[%s0 + $0x2f8] sm:$0xff]
    %v327 = vld [vmem:[%s0 + $0x300] sm:$0xff]
    %v328 = vld [vmem:[%s0 + $0x308] sm:$0xff]
    %v329 = vld [vmem:[%s0 + $0x310] sm:$0xff]
    %v330 = vld [vmem:[%s0 + $0x318] sm:$0xff]
    %v331 = vld [vmem:[%s0 + $0x320] sm:$0xff]
    %v332 = vld [vmem:[%s0 + $0x328] sm:$0xff]
    %v333 = vld [vmem:[%s0 + $0x330] sm:$0xff]
    %v334 = vld [vmem:[%s0 + $0x338] sm:$0xff]
    %v335 = vld [vmem:[%s0 + $0x340] sm:$0xff]
    %v336 = vld [vmem:[%s0 + $0x348] sm:$0xff]
    %v337 = vld [vmem:[%s0 + $0x350] sm:$0xff]
    %v338 = vld [vmem:[%s0 + $0x358] sm:$0xff]
    %v339 = vld [vmem:[%s0 + $0x360] sm:$0xff]
    %v340 = vld [vmem:[%s0 + $0x368] sm:$0xff]
    %v341 = vld [vmem:[%s0 + $0x370] sm:$0xff]
    %v342 = vld [vmem:[%s0 + $0x378] sm:$0xff]
    %v343 = vld [vmem:[%s0 + $0x380] sm:$0xff]
    %v344 = vld [vmem:[%s0 + $0x388] sm:$0xff]
    %v345 = vld [vmem:[%s0 + $0x390] sm:$0xff]
    %v346 = vld [vmem:[%s0 + $0x398] sm:$0xff]
    %v347 = vld [vmem:[%s0 + $0x3a0] sm:$0xff]
    %v348 = vld [vmem:[%s0 + $0x3a8] sm:$0xff]
    %v349 = vld [vmem:[%s0 + $0x3b0] sm:$0xff]
    %v350 = vld [vmem:[%s0 + $0x3b8] sm:$0xff]
    %v351 = vld [vmem:[%s0 + $0x3c0] sm:$0xff]
    %v352 = vld [vmem:[%s0 + $0x3c8] sm:$0xff]
    %v353 = vld [vmem:[%s0 + $0x3d0] sm:$0xff]
    %v354 = vld [vmem:[%s0 + $0x3d8] sm:$0xff]
    %v355 = vld [vmem:[%s0 + $0x3e0] sm:$0xff]
    %v356 = vld [vmem:[%s0 + $0x3e8] sm:$0xff]
    %v357 = vld [vmem:[%s0 + $0x3f0] sm:$0xff]
    %v358 = vld [vmem:[%s0 + $0x3f8] sm:$0xff]
    %v359 = vld [vmem:[%s0 + $0x400] sm:$0xff]
    %v360 = vld [vmem:[%s0 + $0x408] sm:$0xff]
    %v361 = vld [vmem:[%s0 + $0x410] sm:$0xff]
    %v362 = vld [vmem:[%s0 + $0x418] sm:$0xff]
    %v363 = vld [vmem:[%s0 + $0x420] sm:$0xff]
    %v364 = vld [vmem:[%s0 + $0x428] sm:$0xff]
    %v365 = vld [vmem:[%s0 + $0x430] sm:$0xff]
    %v366 = vld [vmem:[%s0 + $0x438] sm:$0xff]
    %v367 = vld [vmem:[%s0 + $0x440] sm:$0xff]
    %v368 = vld [vmem:[%s0 + $0x448] sm:$0xff]
    %v369 = vld [vmem:[%s0 + $0x450] sm:$0xff]
    %v370 = vld [vmem:[%s0 + $0x458] sm:$0xff]
    %v371 = vld [vmem:[%s0 + $0x460] sm:$0xff]
    %v372 = vld [vmem:[%s0 + $0x468] sm:$0xff]
    %v373 = vld [vmem:[%s0 + $0x470] sm:$0xff]
    %v374 = vld [vmem:[%s0 + $0x478] sm:$0xff]
    %v375 = vld [vmem:[%s0 + $0x480] sm:$0xff]
    %v376 = vld [vmem:[%s0 + $0x488] sm:$0xff]
    %v377 = vld [vmem:[%s0 + $0x490] sm:$0xff]
    %v378 = vld [vmem:[%s0 + $0x498] sm:$0xff]
    %v379 = vld [vmem:[%s0 + $0x4a0] sm:$0xff]
    %v380 = vld [vmem:[%s0 + $0x4a8] sm:$0xff]
    %v381 = vld [vmem:[%s0 + $0x4b0] sm:$0xff]
    %v382 = vld [vmem:[%s0 + $0x4b8] sm:$0xff]
    %v383 = vld [vmem:[%s0 + $0x4c0] sm:$0xff]
    %v384 = vld [vmem:[%s0 + $0x4c8] sm:$0xff]
    %v385 = vld [vmem:[%s0 + $0x4d0] sm:$0xff]
    %v386 = vld [vmem:[%s0 + $0x4d8] sm:$0xff]
    %v387 = vld [vmem:[%s0 + $0x4e0] sm:$0xff]
    %v388 = vld [vmem:[%s0 + $0x4e8] sm:$0xff]
    %v389 = vld [vmem:[%s0 + $0x4f0] sm:$0xff]
    %v390 = vld [vmem:[%s0 + $0x4f8] sm:$0xff]
    %v391 = vld [vmem:[%s0 + $0x500] sm:$0xff]
    %v392 = vld [vmem:[%s0 + $0x508] sm:$0xff]
    %v393 = vld [vmem:[%s0 + $0x510] sm:$0xff]
    %v394 = vld [vmem:[%s0 + $0x518] sm:$0xff]
    %v395 = vld [vmem:[%s0 + $0x520] sm:$0xff]
    %v396 = vld [vmem:[%s0 + $0x528] sm:$0xff]
    %v397 = vld [vmem:[%s0 + $0x530] sm:$0xff]
    %v398 = vld [vmem:[%s0 + $0x538] sm:$0xff]
    %v399 = vld [vmem:[%s0 + $0x540] sm:$0xff]
    %v400 = vld [vmem:[%s0 + $0x548] sm:$0xff]
    %v401 = vld [vmem:[%s0 + $0x550] sm:$0xff]
    %v402 = vld [vmem:[%s0 + $0x558] sm:$0xff]
    %v403 = vld [vmem:[%s0 + $0x560] sm:$0xff]
    %v404 = vld [vmem:[%s0 + $0x568] sm:$0xff]
    %v405 = vld [vmem:[%s0 + $0x570] sm:$0xff]
    %v406 = vld [vmem:[%s0 + $0x578] sm:$0xff]
    %v407 = vld [vmem:[%s0 + $0x580] sm:$0xff]
    %v408 = vld [vmem:[%s0 + $0x588] sm:$0xff]
    %v409 = vld [vmem:[%s0 + $0x590] sm:$0xff]
    %v410 = vld [vmem:[%s0 + $0x598] sm:$0xff]
    %v411 = vld [vmem:[%s0 + $0x5a0] sm:$0xff]
    %v412 = vld [vmem:[%s0 + $0x5a8] sm:$0xff]
    %v413 = vld [vmem:[%s0 + $0x5b0] sm:$0xff]
    %v414 = vld [vmem:[%s0 + $0x5b8] sm:$0xff]
    %v415 = vld [vmem:[%s0 + $0x5c0] sm:$0xff]
    %v416 = vld [vmem:[%s0 + $0x5c8] sm:$0xff]
    %v417 = vld [vmem:[%s0 + $0x5d0] sm:$0xff]
    %v418 = vld [vmem:[%s0 + $0x5d8] sm:$0xff]
    %v419 = vld [vmem:[%s0 + $0x5e0] sm:$0xff]
    %v420 = vld [vmem:[%s0 + $0x5e8] sm:$0xff]
    %v421 = vld [vmem:[%s0 + $0x5f0] sm:$0xff]
    %v422 = vld [vmem:[%s0 + $0x5f8] sm:$0xff]
    %v423 = vld [vmem:[%s0 + $0x600] sm:$0xff]
    %v424 = vld [vmem:[%s0 + $0x608] sm:$0xff]
    %v425 = vld [vmem:[%s0 + $0x610] sm:$0xff]
    %v426 = vld [vmem:[%s0 + $0x618] sm:$0xff]
    %v427 = vld [vmem:[%s0 + $0x620] sm:$0xff]
    %v428 = vld [vmem:[%s0 + $0x628] sm:$0xff]
    %v429 = vld [vmem:[%s0 + $0x630] sm:$0xff]
    %v430 = vld [vmem:[%s0 + $0x638] sm:$0xff]
    %v431 = vld [vmem:[%s0 + $0x640] sm:$0xff]
    %v432 = vld [vmem:[%s0 + $0x648] sm:$0xff]
    %v433 = vld [vmem:[%s0 + $0x650] sm:$0xff]
    %v434 = vld [vmem:[%s0 + $0x658] sm:$0xff]
    %v435 = vld [vmem:[%s0 + $0x660] sm:$0xff]
    %v436 = vld [vmem:[%s0 + $0x668] sm:$0xff]
    %v437 = vld [vmem:[%s0 + $0x670] sm:$0xff]
    %v438 = vld [vmem:[%s0 + $0x678] sm:$0xff]
    %v439 = vld [vmem:[%s0 + $0x680] sm:$0xff]
    %v440 = vld [vmem:[%s0 + $0x688] sm:$0xff]
    %v441 = vld [vmem:[%s0 + $0x690] sm:$0xff]
    %v442 = vld [vmem:[%s0 + $0x698] sm:$0xff]
    %v443 = vld [vmem:[%s0 + $0x6a0] sm:$0xff]
    %v444 = vld [vmem:[%s0 + $0x6a8] sm:$0xff]
    %v445 = vld [vmem:[%s0 + $0x6b0] sm:$0xff]
    %v446 = vld [vmem:[%s0 + $0x6b8] sm:$0xff]
    %v447 = vld [vmem:[%s0 + $0x6c0] sm:$0xff]
    %v448 = vld [vmem:[%s0 + $0x6c8] sm:$0xff]
    %v449 = vld [vmem:[%s0 + $0x6d0] sm:$0xff]
    %v450 = vld [vmem:[%s0 + $0x6d8] sm:$0xff]
    %v451 = vld [vmem:[%s0 + $0x6e0] sm:$0xff]
    %v452 = vld [vmem:[%s0 + $0x6e8] sm:$0xff]
    %v453 = vld [vmem:[%s0 + $0x6f0] sm:$0xff]
    %v454 = vld [vmem:[%s0 + $0x6f8] sm:$0xff]
    %v455 = vld [vmem:[%s0 + $0x700] sm:$0xff]
    %v456 = vld [vmem:[%s0 + $0x708] sm:$0xff]
    %v457 = vld [vmem:[%s0 + $0x710] sm:$0xff]
    %v458 = vld [vmem:[%s0 + $0x718] sm:$0xff]
    %v459 = vld [vmem:[%s0 + $0x720] sm:$0xff]
    %v460 = vld [vmem:[%s0 + $0x728] sm:$0xff]
    %v461 = vld [vmem:[%s0 + $0x730] sm:$0xff]
    %v462 = vld [vmem:[%s0 + $0x738] sm:$0xff]
    %v463 = vld [vmem:[%s0 + $0x740] sm:$0xff]
    %v464 = vld [vmem:[%s0 + $0x748] sm:$0xff]
    %v465 = vld [vmem:[%s0 + $0x750] sm:$0xff]
    %v466 = vld [vmem:[%s0 + $0x758] sm:$0xff]
    %v467 = vld [vmem:[%s0 + $0x760] sm:$0xff]
    %v468 = vld [vmem:[%s0 + $0x768] sm:$0xff]
    %v469 = vld [vmem:[%s0 + $0x770] sm:$0xff]
    %v470 = vld [vmem:[%s0 + $0x778] sm:$0xff]
    %v471 = vld [vmem:[%s0 + $0x780] sm:$0xff]
    %v472 = vld [vmem:[%s0 + $0x788] sm:$0xff]
    %v473 = vld [vmem:[%s0 + $0x790] sm:$0xff]
    %v474 = vld [vmem:[%s0 + $0x798] sm:$0xff]
    %v475 = vld [vmem:[%s0 + $0x7a0] sm:$0xff]
    %v476 = vld [vmem:[%s0 + $0x7a8] sm:$0xff]
    %v477 = vld [vmem:[%s0 + $0x7b0] sm:$0xff]
    %v478 = vld [vmem:[%s0 + $0x7b8] sm:$0xff]
    %v479 = vld [vmem:[%s0 + $0x7c0] sm:$0xff]
    %v480 = vld [vmem:[%s0 + $0x7c8] sm:$0xff]
    %v481 = vld [vmem:[%s0 + $0x7d0] sm:$0xff]
    %v482 = vld [vmem:[%s0 + $0x7d8] sm:$0xff]
    %v483 = vld [vmem:[%s0 + $0x7e0] sm:$0xff]
    %v484 = vld [vmem:[%s0 + $0x7e8] sm:$0xff]
    %v485 = vld [vmem:[%s0 + $0x7f0] sm:$0xff]
    %v486 = vld [vmem:[%s0 + $0x7f8] sm:$0xff]
    %v487 = vld [vmem:[%s0 + $0x800] sm:$0xff]
    %v488 = vld [vmem:[%s0 + $0x808] sm:$0xff]
    %v489 = vld [vmem:[%s0 + $0x810] sm:$0xff]
    %v490 = vld [vmem:[%s0 + $0x818] sm:$0xff]
    %v491 = vld [vmem:[%s0 + $0x820] sm:$0xff]
    %v492 = vld [vmem:[%s0 + $0x828] sm:$0xff]
    %v493 = vld [vmem:[%s0 + $0x830] sm:$0xff]
    %v494 = vld [vmem:[%s0 + $0x838] sm:$0xff]
    %v495 = vld [vmem:[%s0 + $0x840] sm:$0xff]
    %v496 = vld [vmem:[%s0 + $0x848] sm:$0xff]
    %v497 = vld [vmem:[%s0 + $0x850] sm:$0xff]
    %v498 = vld [vmem:[%s0 + $0x858] sm:$0xff]
    %v499 = vld [vmem:[%s0 + $0x860] sm:$0xff]
    %v500 = vld [vmem:[%s0 + $0x868] sm:$0xff]
    %v501 = vld [vmem:[%s0 + $0x870] sm:$0xff]
    %v502 = vld [vmem:[%s0 + $0x878] sm:$0xff]
    %v503 = vld [vmem:[%s0 + $0x880] sm:$0xff]
    %v504 = vld [vmem:[%s0 + $0x888] sm:$0xff]
    %v505 = vld [vmem:[%s0 + $0x890] sm:$0xff]
    %v506 = vld [vmem:[%s0 + $0x898] sm:$0xff]
    %v507 = vld [vmem:[%s0 + $0x8a0] sm:$0xff]
    %v508 = vld [vmem:[%s0 + $0x8a8] sm:$0xff]
    %v509 = vld [vmem:[%s0 + $0x8b0] sm:$0xff]
    %v510 = vld [vmem:[%s0 + $0x8b8] sm:$0xff]
    %v511 = vld [vmem:[%s0 + $0x8c0] sm:$0xff]
    %v512 = vld [vmem:[%s0 + $0x8c8] sm:$0xff]
    %v513 = vld [vmem:[%s0 + $0x8d0] sm:$0xff]
    %v514 = vld [vmem:[%s0 + $0x8d8] sm:$0xff]
    %v515 = vld [vmem:[%s0 + $0x8e0] sm:$0xff]
    %v516 = vld [vmem:[%s0 + $0x8e8] sm:$0xff]
    %v517 = vld [vmem:[%s0 + $0x8f0] sm:$0xff]
    %v518 = vld [vmem:[%s0 + $0x8f8] sm:$0xff]
    %519 = vmatpush.msra.mxu0 %v246
    %520 = vmatpush.msra.mxu0 %v245
    %521 = vmatpush.msra.mxu0 %v244
    %522 = vmatpush.msra.mxu0 %v243
    %523 = vmatpush.msra.mxu0 %v242
    %524 = vmatpush.msra.mxu0 %v241
    %525 = vmatpush.msra.mxu0 %v240
    %526 = vmatpush.msra.mxu0 %v239
    %527 = vmatpush.msra.mxu0 %v238
    %528 = vmatpush.msra.mxu0 %v237
    %529 = vmatpush.msra.mxu0 %v236
    %530 = vmatpush.msra.mxu0 %v235
    %531 = vmatpush.msra.mxu0 %v234
    %532 = vmatpush.msra.mxu0 %v233
    %533 = vmatpush.msra.mxu0 %v232
    %534 = vmatpush.msra.mxu0 %v231
    %535 = vmatmul.f32.gmra.mxu0 %v15
    %v536 = vpop.f32.mrf.mxu0
    %v537 = vadd.f32 0.0, %v536
    %538 = vmatmul.f32.gmra.mxu0 %v33
    %v539 = vpop.f32.mrf.mxu0
    %v540 = vadd.f32 0.0, %v539
    %541 = vmatmul.f32.gmra.mxu0 %v51
    %v542 = vpop.f32.mrf.mxu0
    %v543 = vadd.f32 0.0, %v542
    %544 = vmatmul.f32.gmra.mxu0 %v69
    %v545 = vpop.f32.mrf.mxu0
    %v546 = vadd.f32 0.0, %v545
    %547 = vmatmul.f32.gmra.mxu0 %v87
    %v548 = vpop.f32.mrf.mxu0
    %v549 = vadd.f32 0.0, %v548
    %550 = vmatmul.f32.gmra.mxu0 %v105
    %v551 = vpop.f32.mrf.mxu0
    %v552 = vadd.f32 0.0, %v551
    %553 = vmatmul.f32.gmra.mxu0 %v123
    %v554 = vpop.f32.mrf.mxu0
    %v555 = vadd.f32 0.0, %v554
    %556 = vmatmul.f32.gmra.mxu0 %v141
    %v557 = vpop.f32.mrf.mxu0
    %v558 = vadd.f32 0.0, %v557
    %559 = vmatmul.f32.gmra.mxu0 %v159
    %v560 = vpop.f32.mrf.mxu0
    %v561 = vadd.f32 0.0, %v560
    %562 = vmatmul.f32.gmra.mxu0 %v177
    %v563 = vpop.f32.mrf.mxu0
    %v564 = vadd.f32 0.0, %v563
    %565 = vmatmul.f32.gmra.mxu0 %v195
    %v566 = vpop.f32.mrf.mxu0
    %v567 = vadd.f32 0.0, %v566
    %568 = vmatmul.f32.gmra.mxu0 %v213
    %v569 = vpop.f32.mrf.mxu0
    %v570 = vadd.f32 0.0, %v569
    %571 = vdwg.mxu0
    %572 = vmatpush.msra.mxu0 %v262
    %573 = vmatpush.msra.mxu0 %v261
    %574 = vmatpush.msra.mxu0 %v260
    %575 = vmatpush.msra.mxu0 %v259
    %576 = vmatpush.msra.mxu0 %v258
    %577 = vmatpush.msra.mxu0 %v257
    %578 = vmatpush.msra.mxu0 %v256
    %579 = vmatpush.msra.mxu0 %v255
    %580 = vmatpush.msra.mxu0 %v254
    %581 = vmatpush.msra.mxu0 %v253
    %582 = vmatpush.msra.mxu0 %v252
    %583 = vmatpush.msra.mxu0 %v251
    %584 = vmatpush.msra.mxu0 %v250
    %585 = vmatpush.msra.mxu0 %v249
    %586 = vmatpush.msra.mxu0 %v248
    %587 = vmatpush.msra.mxu0 %v247
    %588 = vmatmul.f32.gmra.mxu0 %v16
    %v589 = vpop.f32.mrf.mxu0
    %v590 = vadd.f32 %v537, %v589
    %591 = vmatmul.f32.gmra.mxu0 %v34
    %v592 = vpop.f32.mrf.mxu0
    %v593 = vadd.f32 %v540, %v592
    %594 = vmatmul.f32.gmra.mxu0 %v52
    %v595 = vpop.f32.mrf.mxu0
    %v596 = vadd.f32 %v543, %v595
    %597 = vmatmul.f32.gmra.mxu0 %v70
    %v598 = vpop.f32.mrf.mxu0
    %v599 = vadd.f32 %v546, %v598
    %600 = vmatmul.f32.gmra.mxu0 %v88
    %v601 = vpop.f32.mrf.mxu0
    %v602 = vadd.f32 %v549, %v601
    %603 = vmatmul.f32.gmra.mxu0 %v106
    %v604 = vpop.f32.mrf.mxu0
    %v605 = vadd.f32 %v552, %v604
    %606 = vmatmul.f32.gmra.mxu0 %v124
    %v607 = vpop.f32.mrf.mxu0
    %v608 = vadd.f32 %v555, %v607
    %609 = vmatmul.f32.gmra.mxu0 %v142
    %v610 = vpop.f32.mrf.mxu0
    %v611 = vadd.f32 %v558, %v610
    %612 = vmatmul.f32.gmra.mxu0 %v160
    %v613 = vpop.f32.mrf.mxu0
    %v614 = vadd.f32 %v561, %v613
    %615 = vmatmul.f32.gmra.mxu0 %v178
    %v616 = vpop.f32.mrf.mxu0
    %v617 = vadd.f32 %v564, %v616
    %618 = vmatmul.f32.gmra.mxu0 %v196
    %v619 = vpop.f32.mrf.mxu0
    %v620 = vadd.f32 %v567, %v619
    %621 = vmatmul.f32.gmra.mxu0 %v214
    %v622 = vpop.f32.mrf.mxu0
    %v623 = vadd.f32 %v570, %v622
    %624 = vdwg.mxu0
    %625 = vmatpush.msra.mxu0 %v278
    %626 = vmatpush.msra.mxu0 %v277
    %627 = vmatpush.msra.mxu0 %v276
    %628 = vmatpush.msra.mxu0 %v275
    %629 = vmatpush.msra.mxu0 %v274
    %630 = vmatpush.msra.mxu0 %v273
    %631 = vmatpush.msra.mxu0 %v272
    %632 = vmatpush.msra.mxu0 %v271
    %633 = vmatpush.msra.mxu0 %v270
    %634 = vmatpush.msra.mxu0 %v269
    %635 = vmatpush.msra.mxu0 %v268
    %636 = vmatpush.msra.mxu0 %v267
    %637 = vmatpush.msra.mxu0 %v266
    %638 = vmatpush.msra.mxu0 %v265
    %639 = vmatpush.msra.mxu0 %v264
    %640 = vmatpush.msra.mxu0 %v263
    %641 = vmatmul.f32.gmra.mxu0 %v17
    %v642 = vpop.f32.mrf.mxu0
    %v643 = vadd.f32 %v590, %v642
    %644 = vmatmul.f32.gmra.mxu0 %v35
    %v645 = vpop.f32.mrf.mxu0
    %v646 = vadd.f32 %v593, %v645
    %647 = vmatmul.f32.gmra.mxu0 %v53
    %v648 = vpop.f32.mrf.mxu0
    %v649 = vadd.f32 %v596, %v648
    %650 = vmatmul.f32.gmra.mxu0 %v71
    %v651 = vpop.f32.mrf.mxu0
    %v652 = vadd.f32 %v599, %v651
    %653 = vmatmul.f32.gmra.mxu0 %v89
    %v654 = vpop.f32.mrf.mxu0
    %v655 = vadd.f32 %v602, %v654
    %656 = vmatmul.f32.gmra.mxu0 %v107
    %v657 = vpop.f32.mrf.mxu0
    %v658 = vadd.f32 %v605, %v657
    %659 = vmatmul.f32.gmra.mxu0 %v125
    %v660 = vpop.f32.mrf.mxu0
    %v661 = vadd.f32 %v608, %v660
    %662 = vmatmul.f32.gmra.mxu0 %v143
    %v663 = vpop.f32.mrf.mxu0
    %v664 = vadd.f32 %v611, %v663
    %665 = vmatmul.f32.gmra.mxu0 %v161
    %v666 = vpop.f32.mrf.mxu0
    %v667 = vadd.f32 %v614, %v666
    %668 = vmatmul.f32.gmra.mxu0 %v179
    %v669 = vpop.f32.mrf.mxu0
    %v670 = vadd.f32 %v617, %v669
    %671 = vmatmul.f32.gmra.mxu0 %v197
    %v672 = vpop.f32.mrf.mxu0
    %v673 = vadd.f32 %v620, %v672
    %674 = vmatmul.f32.gmra.mxu0 %v215
    %v675 = vpop.f32.mrf.mxu0
    %v676 = vadd.f32 %v623, %v675
    %677 = vdwg.mxu0
    %678 = vmatpush.msra.mxu0 %v294
    %679 = vmatpush.msra.mxu0 %v293
    %680 = vmatpush.msra.mxu0 %v292
    %681 = vmatpush.msra.mxu0 %v291
    %682 = vmatpush.msra.mxu0 %v290
    %683 = vmatpush.msra.mxu0 %v289
    %684 = vmatpush.msra.mxu0 %v288
    %685 = vmatpush.msra.mxu0 %v287
    %686 = vmatpush.msra.mxu0 %v286
    %687 = vmatpush.msra.mxu0 %v285
    %688 = vmatpush.msra.mxu0 %v284
    %689 = vmatpush.msra.mxu0 %v283
    %690 = vmatpush.msra.mxu0 %v282
    %691 = vmatpush.msra.mxu0 %v281
    %692 = vmatpush.msra.mxu0 %v280
    %693 = vmatpush.msra.mxu0 %v279
    %694 = vmatmul.f32.gmra.mxu0 %v18
    %v695 = vpop.f32.mrf.mxu0
    %v696 = vadd.f32 %v643, %v695
    %697 = vmatmul.f32.gmra.mxu0 %v36
    %v698 = vpop.f32.mrf.mxu0
    %v699 = vadd.f32 %v646, %v698
    %700 = vmatmul.f32.gmra.mxu0 %v54
    %v701 = vpop.f32.mrf.mxu0
    %v702 = vadd.f32 %v649, %v701
    %703 = vmatmul.f32.gmra.mxu0 %v72
    %v704 = vpop.f32.mrf.mxu0
    %v705 = vadd.f32 %v652, %v704
    %706 = vmatmul.f32.gmra.mxu0 %v90
    %v707 = vpop.f32.mrf.mxu0
    %v708 = vadd.f32 %v655, %v707
    %709 = vmatmul.f32.gmra.mxu0 %v108
    %v710 = vpop.f32.mrf.mxu0
    %v711 = vadd.f32 %v658, %v710
    %712 = vmatmul.f32.gmra.mxu0 %v126
    %v713 = vpop.f32.mrf.mxu0
    %v714 = vadd.f32 %v661, %v713
    %715 = vmatmul.f32.gmra.mxu0 %v144
    %v716 = vpop.f32.mrf.mxu0
    %v717 = vadd.f32 %v664, %v716
    %718 = vmatmul.f32.gmra.mxu0 %v162
    %v719 = vpop.f32.mrf.mxu0
    %v720 = vadd.f32 %v667, %v719
    %721 = vmatmul.f32.gmra.mxu0 %v180
    %v722 = vpop.f32.mrf.mxu0
    %v723 = vadd.f32 %v670, %v722
    %724 = vmatmul.f32.gmra.mxu0 %v198
    %v725 = vpop.f32.mrf.mxu0
    %v726 = vadd.f32 %v673, %v725
    %727 = vmatmul.f32.gmra.mxu0 %v216
    %v728 = vpop.f32.mrf.mxu0
    %v729 = vadd.f32 %v676, %v728
    %730 = vdwg.mxu0
    %731 = vmatpush.msra.mxu0 %v310
    %732 = vmatpush.msra.mxu0 %v309
    %733 = vmatpush.msra.mxu0 %v308
    %734 = vmatpush.msra.mxu0 %v307
    %735 = vmatpush.msra.mxu0 %v306
    %736 = vmatpush.msra.mxu0 %v305
    %737 = vmatpush.msra.mxu0 %v304
    %738 = vmatpush.msra.mxu0 %v303
    %739 = vmatpush.msra.mxu0 %v302
    %740 = vmatpush.msra.mxu0 %v301
    %741 = vmatpush.msra.mxu0 %v300
    %742 = vmatpush.msra.mxu0 %v299
    %743 = vmatpush.msra.mxu0 %v298
    %744 = vmatpush.msra.mxu0 %v297
    %745 = vmatpush.msra.mxu0 %v296
    %746 = vmatpush.msra.mxu0 %v295
    %747 = vmatmul.f32.gmra.mxu0 %v19
    %v748 = vpop.f32.mrf.mxu0
    %v749 = vadd.f32 %v696, %v748
    %750 = vmatmul.f32.gmra.mxu0 %v37
    %v751 = vpop.f32.mrf.mxu0
    %v752 = vadd.f32 %v699, %v751
    %753 = vmatmul.f32.gmra.mxu0 %v55
    %v754 = vpop.f32.mrf.mxu0
    %v755 = vadd.f32 %v702, %v754
    %756 = vmatmul.f32.gmra.mxu0 %v73
    %v757 = vpop.f32.mrf.mxu0
    %v758 = vadd.f32 %v705, %v757
    %759 = vmatmul.f32.gmra.mxu0 %v91
    %v760 = vpop.f32.mrf.mxu0
    %v761 = vadd.f32 %v708, %v760
    %762 = vmatmul.f32.gmra.mxu0 %v109
    %v763 = vpop.f32.mrf.mxu0
    %v764 = vadd.f32 %v711, %v763
    %765 = vmatmul.f32.gmra.mxu0 %v127
    %v766 = vpop.f32.mrf.mxu0
    %v767 = vadd.f32 %v714, %v766
    %768 = vmatmul.f32.gmra.mxu0 %v145
    %v769 = vpop.f32.mrf.mxu0
    %v770 = vadd.f32 %v717, %v769
    %771 = vmatmul.f32.gmra.mxu0 %v163
    %v772 = vpop.f32.mrf.mxu0
    %v773 = vadd.f32 %v720, %v772
    %774 = vmatmul.f32.gmra.mxu0 %v181
    %v775 = vpop.f32.mrf.mxu0
    %v776 = vadd.f32 %v723, %v775
    %777 = vmatmul.f32.gmra.mxu0 %v199
    %v778 = vpop.f32.mrf.mxu0
    %v779 = vadd.f32 %v726, %v778
    %780 = vmatmul.f32.gmra.mxu0 %v217
    %v781 = vpop.f32.mrf.mxu0
    %v782 = vadd.f32 %v729, %v781
    %783 = vdwg.mxu0
    %784 = vmatpush.msra.mxu0 %v326
    %785 = vmatpush.msra.mxu0 %v325
    %786 = vmatpush.msra.mxu0 %v324
    %787 = vmatpush.msra.mxu0 %v323
    %788 = vmatpush.msra.mxu0 %v322
    %789 = vmatpush.msra.mxu0 %v321
    %790 = vmatpush.msra.mxu0 %v320
    %791 = vmatpush.msra.mxu0 %v319
    %792 = vmatpush.msra.mxu0 %v318
    %793 = vmatpush.msra.mxu0 %v317
    %794 = vmatpush.msra.mxu0 %v316
    %795 = vmatpush.msra.mxu0 %v315
    %796 = vmatpush.msra.mxu0 %v314
    %797 = vmatpush.msra.mxu0 %v313
    %798 = vmatpush.msra.mxu0 %v312
    %799 = vmatpush.msra.mxu0 %v311
    %800 = vmatmul.f32.gmra.mxu0 %v20
    %v801 = vpop.f32.mrf.mxu0
    %v802 = vadd.f32 %v749, %v801
    %803 = vmatmul.f32.gmra.mxu0 %v38
    %v804 = vpop.f32.mrf.mxu0
    %v805 = vadd.f32 %v752, %v804
    %806 = vmatmul.f32.gmra.mxu0 %v56
    %v807 = vpop.f32.mrf.mxu0
    %v808 = vadd.f32 %v755, %v807
    %809 = vmatmul.f32.gmra.mxu0 %v74
    %v810 = vpop.f32.mrf.mxu0
    %v811 = vadd.f32 %v758, %v810
    %812 = vmatmul.f32.gmra.mxu0 %v92
    %v813 = vpop.f32.mrf.mxu0
    %v814 = vadd.f32 %v761, %v813
    %815 = vmatmul.f32.gmra.mxu0 %v110
    %v816 = vpop.f32.mrf.mxu0
    %v817 = vadd.f32 %v764, %v816
    %818 = vmatmul.f32.gmra.mxu0 %v128
    %v819 = vpop.f32.mrf.mxu0
    %v820 = vadd.f32 %v767, %v819
    %821 = vmatmul.f32.gmra.mxu0 %v146
    %v822 = vpop.f32.mrf.mxu0
    %v823 = vadd.f32 %v770, %v822
    %824 = vmatmul.f32.gmra.mxu0 %v164
    %v825 = vpop.f32.mrf.mxu0
    %v826 = vadd.f32 %v773, %v825
    %827 = vmatmul.f32.gmra.mxu0 %v182
    %v828 = vpop.f32.mrf.mxu0
    %v829 = vadd.f32 %v776, %v828
    %830 = vmatmul.f32.gmra.mxu0 %v200
    %v831 = vpop.f32.mrf.mxu0
    %v832 = vadd.f32 %v779, %v831
    %833 = vmatmul.f32.gmra.mxu0 %v218
    %v834 = vpop.f32.mrf.mxu0
    %v835 = vadd.f32 %v782, %v834
    %836 = vdwg.mxu0
    %837 = vmatpush.msra.mxu0 %v342
    %838 = vmatpush.msra.mxu0 %v341
    %839 = vmatpush.msra.mxu0 %v340
    %840 = vmatpush.msra.mxu0 %v339
    %841 = vmatpush.msra.mxu0 %v338
    %842 = vmatpush.msra.mxu0 %v337
    %843 = vmatpush.msra.mxu0 %v336
    %844 = vmatpush.msra.mxu0 %v335
    %845 = vmatpush.msra.mxu0 %v334
    %846 = vmatpush.msra.mxu0 %v333
    %847 = vmatpush.msra.mxu0 %v332
    %848 = vmatpush.msra.mxu0 %v331
    %849 = vmatpush.msra.mxu0 %v330
    %850 = vmatpush.msra.mxu0 %v329
    %851 = vmatpush.msra.mxu0 %v328
    %852 = vmatpush.msra.mxu0 %v327
    %853 = vmatmul.f32.gmra.mxu0 %v21
    %v854 = vpop.f32.mrf.mxu0
    %v855 = vadd.f32 %v802, %v854
    %856 = vmatmul.f32.gmra.mxu0 %v39
    %v857 = vpop.f32.mrf.mxu0
    %v858 = vadd.f32 %v805, %v857
    %859 = vmatmul.f32.gmra.mxu0 %v57
    %v860 = vpop.f32.mrf.mxu0
    %v861 = vadd.f32 %v808, %v860
    %862 = vmatmul.f32.gmra.mxu0 %v75
    %v863 = vpop.f32.mrf.mxu0
    %v864 = vadd.f32 %v811, %v863
    %865 = vmatmul.f32.gmra.mxu0 %v93
    %v866 = vpop.f32.mrf.mxu0
    %v867 = vadd.f32 %v814, %v866
    %868 = vmatmul.f32.gmra.mxu0 %v111
    %v869 = vpop.f32.mrf.mxu0
    %v870 = vadd.f32 %v817, %v869
    %871 = vmatmul.f32.gmra.mxu0 %v129
    %v872 = vpop.f32.mrf.mxu0
    %v873 = vadd.f32 %v820, %v872
    %874 = vmatmul.f32.gmra.mxu0 %v147
    %v875 = vpop.f32.mrf.mxu0
    %v876 = vadd.f32 %v823, %v875
    %877 = vmatmul.f32.gmra.mxu0 %v165
    %v878 = vpop.f32.mrf.mxu0
    %v879 = vadd.f32 %v826, %v878
    %880 = vmatmul.f32.gmra.mxu0 %v183
    %v881 = vpop.f32.mrf.mxu0
    %v882 = vadd.f32 %v829, %v881
    %883 = vmatmul.f32.gmra.mxu0 %v201
    %v884 = vpop.f32.mrf.mxu0
    %v885 = vadd.f32 %v832, %v884
    %886 = vmatmul.f32.gmra.mxu0 %v219
    %v887 = vpop.f32.mrf.mxu0
    %v888 = vadd.f32 %v835, %v887
    %889 = vdwg.mxu0
    %890 = vmatpush.msra.mxu0 %v358
    %891 = vmatpush.msra.mxu0 %v357
    %892 = vmatpush.msra.mxu0 %v356
    %893 = vmatpush.msra.mxu0 %v355
    %894 = vmatpush.msra.mxu0 %v354
    %895 = vmatpush.msra.mxu0 %v353
    %896 = vmatpush.msra.mxu0 %v352
    %897 = vmatpush.msra.mxu0 %v351
    %898 = vmatpush.msra.mxu0 %v350
    %899 = vmatpush.msra.mxu0 %v349
    %900 = vmatpush.msra.mxu0 %v348
    %901 = vmatpush.msra.mxu0 %v347
    %902 = vmatpush.msra.mxu0 %v346
    %903 = vmatpush.msra.mxu0 %v345
    %904 = vmatpush.msra.mxu0 %v344
    %905 = vmatpush.msra.mxu0 %v343
    %906 = vmatmul.f32.gmra.mxu0 %v22
    %v907 = vpop.f32.mrf.mxu0
    %v908 = vadd.f32 %v855, %v907
    %909 = vmatmul.f32.gmra.mxu0 %v40
    %v910 = vpop.f32.mrf.mxu0
    %v911 = vadd.f32 %v858, %v910
    %912 = vmatmul.f32.gmra.mxu0 %v58
    %v913 = vpop.f32.mrf.mxu0
    %v914 = vadd.f32 %v861, %v913
    %915 = vmatmul.f32.gmra.mxu0 %v76
    %v916 = vpop.f32.mrf.mxu0
    %v917 = vadd.f32 %v864, %v916
    %918 = vmatmul.f32.gmra.mxu0 %v94
    %v919 = vpop.f32.mrf.mxu0
    %v920 = vadd.f32 %v867, %v919
    %921 = vmatmul.f32.gmra.mxu0 %v112
    %v922 = vpop.f32.mrf.mxu0
    %v923 = vadd.f32 %v870, %v922
    %924 = vmatmul.f32.gmra.mxu0 %v130
    %v925 = vpop.f32.mrf.mxu0
    %v926 = vadd.f32 %v873, %v925
    %927 = vmatmul.f32.gmra.mxu0 %v148
    %v928 = vpop.f32.mrf.mxu0
    %v929 = vadd.f32 %v876, %v928
    %930 = vmatmul.f32.gmra.mxu0 %v166
    %v931 = vpop.f32.mrf.mxu0
    %v932 = vadd.f32 %v879, %v931
    %933 = vmatmul.f32.gmra.mxu0 %v184
    %v934 = vpop.f32.mrf.mxu0
    %v935 = vadd.f32 %v882, %v934
    %936 = vmatmul.f32.gmra.mxu0 %v202
    %v937 = vpop.f32.mrf.mxu0
    %v938 = vadd.f32 %v885, %v937
    %939 = vmatmul.f32.gmra.mxu0 %v220
    %v940 = vpop.f32.mrf.mxu0
    %v941 = vadd.f32 %v888, %v940
    %942 = vdwg.mxu0
    %943 = vmatpush.msra.mxu0 %v374
    %944 = vmatpush.msra.mxu0 %v373
    %945 = vmatpush.msra.mxu0 %v372
    %946 = vmatpush.msra.mxu0 %v371
    %947 = vmatpush.msra.mxu0 %v370
    %948 = vmatpush.msra.mxu0 %v369
    %949 = vmatpush.msra.mxu0 %v368
    %950 = vmatpush.msra.mxu0 %v367
    %951 = vmatpush.msra.mxu0 %v366
    %952 = vmatpush.msra.mxu0 %v365
    %953 = vmatpush.msra.mxu0 %v364
    %954 = vmatpush.msra.mxu0 %v363
    %955 = vmatpush.msra.mxu0 %v362
    %956 = vmatpush.msra.mxu0 %v361
    %957 = vmatpush.msra.mxu0 %v360
    %958 = vmatpush.msra.mxu0 %v359
    %959 = vmatmul.f32.gmra.mxu0 %v23
    %v960 = vpop.f32.mrf.mxu0
    %v961 = vadd.f32 %v908, %v960
    %962 = vmatmul.f32.gmra.mxu0 %v41
    %v963 = vpop.f32.mrf.mxu0
    %v964 = vadd.f32 %v911, %v963
    %965 = vmatmul.f32.gmra.mxu0 %v59
    %v966 = vpop.f32.mrf.mxu0
    %v967 = vadd.f32 %v914, %v966
    %968 = vmatmul.f32.gmra.mxu0 %v77
    %v969 = vpop.f32.mrf.mxu0
    %v970 = vadd.f32 %v917, %v969
    %971 = vmatmul.f32.gmra.mxu0 %v95
    %v972 = vpop.f32.mrf.mxu0
    %v973 = vadd.f32 %v920, %v972
    %974 = vmatmul.f32.gmra.mxu0 %v113
    %v975 = vpop.f32.mrf.mxu0
    %v976 = vadd.f32 %v923, %v975
    %977 = vmatmul.f32.gmra.mxu0 %v131
    %v978 = vpop.f32.mrf.mxu0
    %v979 = vadd.f32 %v926, %v978
    %980 = vmatmul.f32.gmra.mxu0 %v149
    %v981 = vpop.f32.mrf.mxu0
    %v982 = vadd.f32 %v929, %v981
    %983 = vmatmul.f32.gmra.mxu0 %v167
    %v984 = vpop.f32.mrf.mxu0
    %v985 = vadd.f32 %v932, %v984
    %986 = vmatmul.f32.gmra.mxu0 %v185
    %v987 = vpop.f32.mrf.mxu0
    %v988 = vadd.f32 %v935, %v987
    %989 = vmatmul.f32.gmra.mxu0 %v203
    %v990 = vpop.f32.mrf.mxu0
    %v991 = vadd.f32 %v938, %v990
    %992 = vmatmul.f32.gmra.mxu0 %v221
    %v993 = vpop.f32.mrf.mxu0
    %v994 = vadd.f32 %v941, %v993
    %995 = vdwg.mxu0
    %996 = vmatpush.msra.mxu0 %v390
    %997 = vmatpush.msra.mxu0 %v389
    %998 = vmatpush.msra.mxu0 %v388
    %999 = vmatpush.msra.mxu0 %v387
    %1000 = vmatpush.msra.mxu0 %v386
    %1001 = vmatpush.msra.mxu0 %v385
    %1002 = vmatpush.msra.mxu0 %v384
    %1003 = vmatpush.msra.mxu0 %v383
    %1004 = vmatpush.msra.mxu0 %v382
    %1005 = vmatpush.msra.mxu0 %v381
    %1006 = vmatpush.msra.mxu0 %v380
    %1007 = vmatpush.msra.mxu0 %v379
    %1008 = vmatpush.msra.mxu0 %v378
    %1009 = vmatpush.msra.mxu0 %v377
    %1010 = vmatpush.msra.mxu0 %v376
    %1011 = vmatpush.msra.mxu0 %v375
    %1012 = vmatmul.f32.gmra.mxu0 %v24
    %v1013 = vpop.f32.mrf.mxu0
    %v1014 = vadd.f32 %v961, %v1013
    %1015 = vmatmul.f32.gmra.mxu0 %v42
    %v1016 = vpop.f32.mrf.mxu0
    %v1017 = vadd.f32 %v964, %v1016
    %1018 = vmatmul.f32.gmra.mxu0 %v60
    %v1019 = vpop.f32.mrf.mxu0
    %v1020 = vadd.f32 %v967, %v1019
    %1021 = vmatmul.f32.gmra.mxu0 %v78
    %v1022 = vpop.f32.mrf.mxu0
    %v1023 = vadd.f32 %v970, %v1022
    %1024 = vmatmul.f32.gmra.mxu0 %v96
    %v1025 = vpop.f32.mrf.mxu0
    %v1026 = vadd.f32 %v973, %v1025
    %1027 = vmatmul.f32.gmra.mxu0 %v114
    %v1028 = vpop.f32.mrf.mxu0
    %v1029 = vadd.f32 %v976, %v1028
    %1030 = vmatmul.f32.gmra.mxu0 %v132
    %v1031 = vpop.f32.mrf.mxu0
    %v1032 = vadd.f32 %v979, %v1031
    %1033 = vmatmul.f32.gmra.mxu0 %v150
    %v1034 = vpop.f32.mrf.mxu0
    %v1035 = vadd.f32 %v982, %v1034
    %1036 = vmatmul.f32.gmra.mxu0 %v168
    %v1037 = vpop.f32.mrf.mxu0
    %v1038 = vadd.f32 %v985, %v1037
    %1039 = vmatmul.f32.gmra.mxu0 %v186
    %v1040 = vpop.f32.mrf.mxu0
    %v1041 = vadd.f32 %v988, %v1040
    %1042 = vmatmul.f32.gmra.mxu0 %v204
    %v1043 = vpop.f32.mrf.mxu0
    %v1044 = vadd.f32 %v991, %v1043
    %1045 = vmatmul.f32.gmra.mxu0 %v222
    %v1046 = vpop.f32.mrf.mxu0
    %v1047 = vadd.f32 %v994, %v1046
    %1048 = vdwg.mxu0
    %1049 = vmatpush.msra.mxu0 %v406
    %1050 = vmatpush.msra.mxu0 %v405
    %1051 = vmatpush.msra.mxu0 %v404
    %1052 = vmatpush.msra.mxu0 %v403
    %1053 = vmatpush.msra.mxu0 %v402
    %1054 = vmatpush.msra.mxu0 %v401
    %1055 = vmatpush.msra.mxu0 %v400
    %1056 = vmatpush.msra.mxu0 %v399
    %1057 = vmatpush.msra.mxu0 %v398
    %1058 = vmatpush.msra.mxu0 %v397
    %1059 = vmatpush.msra.mxu0 %v396
    %1060 = vmatpush.msra.mxu0 %v395
    %1061 = vmatpush.msra.mxu0 %v394
    %1062 = vmatpush.msra.mxu0 %v393
    %1063 = vmatpush.msra.mxu0 %v392
    %1064 = vmatpush.msra.mxu0 %v391
    %1065 = vmatmul.f32.gmra.mxu0 %v25
    %v1066 = vpop.f32.mrf.mxu0
    %v1067 = vadd.f32 %v1014, %v1066
    %1068 = vmatmul.f32.gmra.mxu0 %v43
    %v1069 = vpop.f32.mrf.mxu0
    %v1070 = vadd.f32 %v1017, %v1069
    %1071 = vmatmul.f32.gmra.mxu0 %v61
    %v1072 = vpop.f32.mrf.mxu0
    %v1073 = vadd.f32 %v1020, %v1072
    %1074 = vmatmul.f32.gmra.mxu0 %v79
    %v1075 = vpop.f32.mrf.mxu0
    %v1076 = vadd.f32 %v1023, %v1075
    %1077 = vmatmul.f32.gmra.mxu0 %v97
    %v1078 = vpop.f32.mrf.mxu0
    %v1079 = vadd.f32 %v1026, %v1078
    %1080 = vmatmul.f32.gmra.mxu0 %v115
    %v1081 = vpop.f32.mrf.mxu0
    %v1082 = vadd.f32 %v1029, %v1081
    %1083 = vmatmul.f32.gmra.mxu0 %v133
    %v1084 = vpop.f32.mrf.mxu0
    %v1085 = vadd.f32 %v1032, %v1084
    %1086 = vmatmul.f32.gmra.mxu0 %v151
    %v1087 = vpop.f32.mrf.mxu0
    %v1088 = vadd.f32 %v1035, %v1087
    %1089 = vmatmul.f32.gmra.mxu0 %v169
    %v1090 = vpop.f32.mrf.mxu0
    %v1091 = vadd.f32 %v1038, %v1090
    %1092 = vmatmul.f32.gmra.mxu0 %v187
    %v1093 = vpop.f32.mrf.mxu0
    %v1094 = vadd.f32 %v1041, %v1093
    %1095 = vmatmul.f32.gmra.mxu0 %v205
    %v1096 = vpop.f32.mrf.mxu0
    %v1097 = vadd.f32 %v1044, %v1096
    %1098 = vmatmul.f32.gmra.mxu0 %v223
    %v1099 = vpop.f32.mrf.mxu0
    %v1100 = vadd.f32 %v1047, %v1099
    %1101 = vdwg.mxu0
    %1102 = vmatpush.msra.mxu0 %v422
    %1103 = vmatpush.msra.mxu0 %v421
    %1104 = vmatpush.msra.mxu0 %v420
    %1105 = vmatpush.msra.mxu0 %v419
    %1106 = vmatpush.msra.mxu0 %v418
    %1107 = vmatpush.msra.mxu0 %v417
    %1108 = vmatpush.msra.mxu0 %v416
    %1109 = vmatpush.msra.mxu0 %v415
    %1110 = vmatpush.msra.mxu0 %v414
    %1111 = vmatpush.msra.mxu0 %v413
    %1112 = vmatpush.msra.mxu0 %v412
    %1113 = vmatpush.msra.mxu0 %v411
    %1114 = vmatpush.msra.mxu0 %v410
    %1115 = vmatpush.msra.mxu0 %v409
    %1116 = vmatpush.msra.mxu0 %v408
    %1117 = vmatpush.msra.mxu0 %v407
    %1118 = vmatmul.f32.gmra.mxu0 %v26
    %v1119 = vpop.f32.mrf.mxu0
    %v1120 = vadd.f32 %v1067, %v1119
    %1121 = vmatmul.f32.gmra.mxu0 %v44
    %v1122 = vpop.f32.mrf.mxu0
    %v1123 = vadd.f32 %v1070, %v1122
    %1124 = vmatmul.f32.gmra.mxu0 %v62
    %v1125 = vpop.f32.mrf.mxu0
    %v1126 = vadd.f32 %v1073, %v1125
    %1127 = vmatmul.f32.gmra.mxu0 %v80
    %v1128 = vpop.f32.mrf.mxu0
    %v1129 = vadd.f32 %v1076, %v1128
    %1130 = vmatmul.f32.gmra.mxu0 %v98
    %v1131 = vpop.f32.mrf.mxu0
    %v1132 = vadd.f32 %v1079, %v1131
    %1133 = vmatmul.f32.gmra.mxu0 %v116
    %v1134 = vpop.f32.mrf.mxu0
    %v1135 = vadd.f32 %v1082, %v1134
    %1136 = vmatmul.f32.gmra.mxu0 %v134
    %v1137 = vpop.f32.mrf.mxu0
    %v1138 = vadd.f32 %v1085, %v1137
    %1139 = vmatmul.f32.gmra.mxu0 %v152
    %v1140 = vpop.f32.mrf.mxu0
    %v1141 = vadd.f32 %v1088, %v1140
    %1142 = vmatmul.f32.gmra.mxu0 %v170
    %v1143 = vpop.f32.mrf.mxu0
    %v1144 = vadd.f32 %v1091, %v1143
    %1145 = vmatmul.f32.gmra.mxu0 %v188
    %v1146 = vpop.f32.mrf.mxu0
    %v1147 = vadd.f32 %v1094, %v1146
    %1148 = vmatmul.f32.gmra.mxu0 %v206
    %v1149 = vpop.f32.mrf.mxu0
    %v1150 = vadd.f32 %v1097, %v1149
    %1151 = vmatmul.f32.gmra.mxu0 %v224
    %v1152 = vpop.f32.mrf.mxu0
    %v1153 = vadd.f32 %v1100, %v1152
    %1154 = vdwg.mxu0
    %1155 = vmatpush.msra.mxu0 %v438
    %1156 = vmatpush.msra.mxu0 %v437
    %1157 = vmatpush.msra.mxu0 %v436
    %1158 = vmatpush.msra.mxu0 %v435
    %1159 = vmatpush.msra.mxu0 %v434
    %1160 = vmatpush.msra.mxu0 %v433
    %1161 = vmatpush.msra.mxu0 %v432
    %1162 = vmatpush.msra.mxu0 %v431
    %1163 = vmatpush.msra.mxu0 %v430
    %1164 = vmatpush.msra.mxu0 %v429
    %1165 = vmatpush.msra.mxu0 %v428
    %1166 = vmatpush.msra.mxu0 %v427
    %1167 = vmatpush.msra.mxu0 %v426
    %1168 = vmatpush.msra.mxu0 %v425
    %1169 = vmatpush.msra.mxu0 %v424
    %1170 = vmatpush.msra.mxu0 %v423
    %1171 = vmatmul.f32.gmra.mxu0 %v27
    %v1172 = vpop.f32.mrf.mxu0
    %v1173 = vadd.f32 %v1120, %v1172
    %1174 = vmatmul.f32.gmra.mxu0 %v45
    %v1175 = vpop.f32.mrf.mxu0
    %v1176 = vadd.f32 %v1123, %v1175
    %1177 = vmatmul.f32.gmra.mxu0 %v63
    %v1178 = vpop.f32.mrf.mxu0
    %v1179 = vadd.f32 %v1126, %v1178
    %1180 = vmatmul.f32.gmra.mxu0 %v81
    %v1181 = vpop.f32.mrf.mxu0
    %v1182 = vadd.f32 %v1129, %v1181
    %1183 = vmatmul.f32.gmra.mxu0 %v99
    %v1184 = vpop.f32.mrf.mxu0
    %v1185 = vadd.f32 %v1132, %v1184
    %1186 = vmatmul.f32.gmra.mxu0 %v117
    %v1187 = vpop.f32.mrf.mxu0
    %v1188 = vadd.f32 %v1135, %v1187
    %1189 = vmatmul.f32.gmra.mxu0 %v135
    %v1190 = vpop.f32.mrf.mxu0
    %v1191 = vadd.f32 %v1138, %v1190
    %1192 = vmatmul.f32.gmra.mxu0 %v153
    %v1193 = vpop.f32.mrf.mxu0
    %v1194 = vadd.f32 %v1141, %v1193
    %1195 = vmatmul.f32.gmra.mxu0 %v171
    %v1196 = vpop.f32.mrf.mxu0
    %v1197 = vadd.f32 %v1144, %v1196
    %1198 = vmatmul.f32.gmra.mxu0 %v189
    %v1199 = vpop.f32.mrf.mxu0
    %v1200 = vadd.f32 %v1147, %v1199
    %1201 = vmatmul.f32.gmra.mxu0 %v207
    %v1202 = vpop.f32.mrf.mxu0
    %v1203 = vadd.f32 %v1150, %v1202
    %1204 = vmatmul.f32.gmra.mxu0 %v225
    %v1205 = vpop.f32.mrf.mxu0
    %v1206 = vadd.f32 %v1153, %v1205
    %1207 = vdwg.mxu0
    %1208 = vmatpush.msra.mxu0 %v454
    %1209 = vmatpush.msra.mxu0 %v453
    %1210 = vmatpush.msra.mxu0 %v452
    %1211 = vmatpush.msra.mxu0 %v451
    %1212 = vmatpush.msra.mxu0 %v450
    %1213 = vmatpush.msra.mxu0 %v449
    %1214 = vmatpush.msra.mxu0 %v448
    %1215 = vmatpush.msra.mxu0 %v447
    %1216 = vmatpush.msra.mxu0 %v446
    %1217 = vmatpush.msra.mxu0 %v445
    %1218 = vmatpush.msra.mxu0 %v444
    %1219 = vmatpush.msra.mxu0 %v443
    %1220 = vmatpush.msra.mxu0 %v442
    %1221 = vmatpush.msra.mxu0 %v441
    %1222 = vmatpush.msra.mxu0 %v440
    %1223 = vmatpush.msra.mxu0 %v439
    %1224 = vmatmul.f32.gmra.mxu0 %v28
    %v1225 = vpop.f32.mrf.mxu0
    %v1226 = vadd.f32 %v1173, %v1225
    %1227 = vmatmul.f32.gmra.mxu0 %v46
    %v1228 = vpop.f32.mrf.mxu0
    %v1229 = vadd.f32 %v1176, %v1228
    %1230 = vmatmul.f32.gmra.mxu0 %v64
    %v1231 = vpop.f32.mrf.mxu0
    %v1232 = vadd.f32 %v1179, %v1231
    %1233 = vmatmul.f32.gmra.mxu0 %v82
    %v1234 = vpop.f32.mrf.mxu0
    %v1235 = vadd.f32 %v1182, %v1234
    %1236 = vmatmul.f32.gmra.mxu0 %v100
    %v1237 = vpop.f32.mrf.mxu0
    %v1238 = vadd.f32 %v1185, %v1237
    %1239 = vmatmul.f32.gmra.mxu0 %v118
    %v1240 = vpop.f32.mrf.mxu0
    %v1241 = vadd.f32 %v1188, %v1240
    %1242 = vmatmul.f32.gmra.mxu0 %v136
    %v1243 = vpop.f32.mrf.mxu0
    %v1244 = vadd.f32 %v1191, %v1243
    %1245 = vmatmul.f32.gmra.mxu0 %v154
    %v1246 = vpop.f32.mrf.mxu0
    %v1247 = vadd.f32 %v1194, %v1246
    %1248 = vmatmul.f32.gmra.mxu0 %v172
    %v1249 = vpop.f32.mrf.mxu0
    %v1250 = vadd.f32 %v1197, %v1249
    %1251 = vmatmul.f32.gmra.mxu0 %v190
    %v1252 = vpop.f32.mrf.mxu0
    %v1253 = vadd.f32 %v1200, %v1252
    %1254 = vmatmul.f32.gmra.mxu0 %v208
    %v1255 = vpop.f32.mrf.mxu0
    %v1256 = vadd.f32 %v1203, %v1255
    %1257 = vmatmul.f32.gmra.mxu0 %v226
    %v1258 = vpop.f32.mrf.mxu0
    %v1259 = vadd.f32 %v1206, %v1258
    %1260 = vdwg.mxu0
    %1261 = vmatpush.msra.mxu0 %v470
    %1262 = vmatpush.msra.mxu0 %v469
    %1263 = vmatpush.msra.mxu0 %v468
    %1264 = vmatpush.msra.mxu0 %v467
    %1265 = vmatpush.msra.mxu0 %v466
    %1266 = vmatpush.msra.mxu0 %v465
    %1267 = vmatpush.msra.mxu0 %v464
    %1268 = vmatpush.msra.mxu0 %v463
    %1269 = vmatpush.msra.mxu0 %v462
    %1270 = vmatpush.msra.mxu0 %v461
    %1271 = vmatpush.msra.mxu0 %v460
    %1272 = vmatpush.msra.mxu0 %v459
    %1273 = vmatpush.msra.mxu0 %v458
    %1274 = vmatpush.msra.mxu0 %v457
    %1275 = vmatpush.msra.mxu0 %v456
    %1276 = vmatpush.msra.mxu0 %v455
    %1277 = vmatmul.f32.gmra.mxu0 %v29
    %v1278 = vpop.f32.mrf.mxu0
    %v1279 = vadd.f32 %v1226, %v1278
    %1280 = vmatmul.f32.gmra.mxu0 %v47
    %v1281 = vpop.f32.mrf.mxu0
    %v1282 = vadd.f32 %v1229, %v1281
    %1283 = vmatmul.f32.gmra.mxu0 %v65
    %v1284 = vpop.f32.mrf.mxu0
    %v1285 = vadd.f32 %v1232, %v1284
    %1286 = vmatmul.f32.gmra.mxu0 %v83
    %v1287 = vpop.f32.mrf.mxu0
    %v1288 = vadd.f32 %v1235, %v1287
    %1289 = vmatmul.f32.gmra.mxu0 %v101
    %v1290 = vpop.f32.mrf.mxu0
    %v1291 = vadd.f32 %v1238, %v1290
    %1292 = vmatmul.f32.gmra.mxu0 %v119
    %v1293 = vpop.f32.mrf.mxu0
    %v1294 = vadd.f32 %v1241, %v1293
    %1295 = vmatmul.f32.gmra.mxu0 %v137
    %v1296 = vpop.f32.mrf.mxu0
    %v1297 = vadd.f32 %v1244, %v1296
    %1298 = vmatmul.f32.gmra.mxu0 %v155
    %v1299 = vpop.f32.mrf.mxu0
    %v1300 = vadd.f32 %v1247, %v1299
    %1301 = vmatmul.f32.gmra.mxu0 %v173
    %v1302 = vpop.f32.mrf.mxu0
    %v1303 = vadd.f32 %v1250, %v1302
    %1304 = vmatmul.f32.gmra.mxu0 %v191
    %v1305 = vpop.f32.mrf.mxu0
    %v1306 = vadd.f32 %v1253, %v1305
    %1307 = vmatmul.f32.gmra.mxu0 %v209
    %v1308 = vpop.f32.mrf.mxu0
    %v1309 = vadd.f32 %v1256, %v1308
    %1310 = vmatmul.f32.gmra.mxu0 %v227
    %v1311 = vpop.f32.mrf.mxu0
    %v1312 = vadd.f32 %v1259, %v1311
    %1313 = vdwg.mxu0
    %1314 = vmatpush.msra.mxu0 %v486
    %1315 = vmatpush.msra.mxu0 %v485
    %1316 = vmatpush.msra.mxu0 %v484
    %1317 = vmatpush.msra.mxu0 %v483
    %1318 = vmatpush.msra.mxu0 %v482
    %1319 = vmatpush.msra.mxu0 %v481
    %1320 = vmatpush.msra.mxu0 %v480
    %1321 = vmatpush.msra.mxu0 %v479
    %1322 = vmatpush.msra.mxu0 %v478
    %1323 = vmatpush.msra.mxu0 %v477
    %1324 = vmatpush.msra.mxu0 %v476
    %1325 = vmatpush.msra.mxu0 %v475
    %1326 = vmatpush.msra.mxu0 %v474
    %1327 = vmatpush.msra.mxu0 %v473
    %1328 = vmatpush.msra.mxu0 %v472
    %1329 = vmatpush.msra.mxu0 %v471
    %1330 = vmatmul.f32.gmra.mxu0 %v30
    %v1331 = vpop.f32.mrf.mxu0
    %v1332 = vadd.f32 %v1279, %v1331
    %1333 = vmatmul.f32.gmra.mxu0 %v48
    %v1334 = vpop.f32.mrf.mxu0
    %v1335 = vadd.f32 %v1282, %v1334
    %1336 = vmatmul.f32.gmra.mxu0 %v66
    %v1337 = vpop.f32.mrf.mxu0
    %v1338 = vadd.f32 %v1285, %v1337
    %1339 = vmatmul.f32.gmra.mxu0 %v84
    %v1340 = vpop.f32.mrf.mxu0
    %v1341 = vadd.f32 %v1288, %v1340
    %1342 = vmatmul.f32.gmra.mxu0 %v102
    %v1343 = vpop.f32.mrf.mxu0
    %v1344 = vadd.f32 %v1291, %v1343
    %1345 = vmatmul.f32.gmra.mxu0 %v120
    %v1346 = vpop.f32.mrf.mxu0
    %v1347 = vadd.f32 %v1294, %v1346
    %1348 = vmatmul.f32.gmra.mxu0 %v138
    %v1349 = vpop.f32.mrf.mxu0
    %v1350 = vadd.f32 %v1297, %v1349
    %1351 = vmatmul.f32.gmra.mxu0 %v156
    %v1352 = vpop.f32.mrf.mxu0
    %v1353 = vadd.f32 %v1300, %v1352
    %1354 = vmatmul.f32.gmra.mxu0 %v174
    %v1355 = vpop.f32.mrf.mxu0
    %v1356 = vadd.f32 %v1303, %v1355
    %1357 = vmatmul.f32.gmra.mxu0 %v192
    %v1358 = vpop.f32.mrf.mxu0
    %v1359 = vadd.f32 %v1306, %v1358
    %1360 = vmatmul.f32.gmra.mxu0 %v210
    %v1361 = vpop.f32.mrf.mxu0
    %v1362 = vadd.f32 %v1309, %v1361
    %1363 = vmatmul.f32.gmra.mxu0 %v228
    %v1364 = vpop.f32.mrf.mxu0
    %v1365 = vadd.f32 %v1312, %v1364
    %1366 = vdwg.mxu0
    %1367 = vmatpush.msra.mxu0 %v502
    %1368 = vmatpush.msra.mxu0 %v501
    %1369 = vmatpush.msra.mxu0 %v500
    %1370 = vmatpush.msra.mxu0 %v499
    %1371 = vmatpush.msra.mxu0 %v498
    %1372 = vmatpush.msra.mxu0 %v497
    %1373 = vmatpush.msra.mxu0 %v496
    %1374 = vmatpush.msra.mxu0 %v495
    %1375 = vmatpush.msra.mxu0 %v494
    %1376 = vmatpush.msra.mxu0 %v493
    %1377 = vmatpush.msra.mxu0 %v492
    %1378 = vmatpush.msra.mxu0 %v491
    %1379 = vmatpush.msra.mxu0 %v490
    %1380 = vmatpush.msra.mxu0 %v489
    %1381 = vmatpush.msra.mxu0 %v488
    %1382 = vmatpush.msra.mxu0 %v487
    %1383 = vmatmul.f32.gmra.mxu0 %v31
    %v1384 = vpop.f32.mrf.mxu0
    %v1385 = vadd.f32 %v1332, %v1384
    %1386 = vmatmul.f32.gmra.mxu0 %v49
    %v1387 = vpop.f32.mrf.mxu0
    %v1388 = vadd.f32 %v1335, %v1387
    %1389 = vmatmul.f32.gmra.mxu0 %v67
    %v1390 = vpop.f32.mrf.mxu0
    %v1391 = vadd.f32 %v1338, %v1390
    %1392 = vmatmul.f32.gmra.mxu0 %v85
    %v1393 = vpop.f32.mrf.mxu0
    %v1394 = vadd.f32 %v1341, %v1393
    %1395 = vmatmul.f32.gmra.mxu0 %v103
    %v1396 = vpop.f32.mrf.mxu0
    %v1397 = vadd.f32 %v1344, %v1396
    %1398 = vmatmul.f32.gmra.mxu0 %v121
    %v1399 = vpop.f32.mrf.mxu0
    %v1400 = vadd.f32 %v1347, %v1399
    %1401 = vmatmul.f32.gmra.mxu0 %v139
    %v1402 = vpop.f32.mrf.mxu0
    %v1403 = vadd.f32 %v1350, %v1402
    %1404 = vmatmul.f32.gmra.mxu0 %v157
    %v1405 = vpop.f32.mrf.mxu0
    %v1406 = vadd.f32 %v1353, %v1405
    %1407 = vmatmul.f32.gmra.mxu0 %v175
    %v1408 = vpop.f32.mrf.mxu0
    %v1409 = vadd.f32 %v1356, %v1408
    %1410 = vmatmul.f32.gmra.mxu0 %v193
    %v1411 = vpop.f32.mrf.mxu0
    %v1412 = vadd.f32 %v1359, %v1411
    %1413 = vmatmul.f32.gmra.mxu0 %v211
    %v1414 = vpop.f32.mrf.mxu0
    %v1415 = vadd.f32 %v1362, %v1414
    %1416 = vmatmul.f32.gmra.mxu0 %v229
    %v1417 = vpop.f32.mrf.mxu0
    %v1418 = vadd.f32 %v1365, %v1417
    %1419 = vdwg.mxu0
    %1420 = vmatpush.msra.mxu0 %v518
    %1421 = vmatpush.msra.mxu0 %v517
    %1422 = vmatpush.msra.mxu0 %v516
    %1423 = vmatpush.msra.mxu0 %v515
    %1424 = vmatpush.msra.mxu0 %v514
    %1425 = vmatpush.msra.mxu0 %v513
    %1426 = vmatpush.msra.mxu0 %v512
    %1427 = vmatpush.msra.mxu0 %v511
    %1428 = vmatpush.msra.mxu0 %v510
    %1429 = vmatpush.msra.mxu0 %v509
    %1430 = vmatpush.msra.mxu0 %v508
    %1431 = vmatpush.msra.mxu0 %v507
    %1432 = vmatpush.msra.mxu0 %v506
    %1433 = vmatpush.msra.mxu0 %v505
    %1434 = vmatpush.msra.mxu0 %v504
    %1435 = vmatpush.msra.mxu0 %v503
    %1436 = vmatmul.f32.gmra.mxu0 %v32
    %v1437 = vpop.f32.mrf.mxu0
    %v1438 = vadd.f32 %v1385, %v1437
    %1439 = vmatmul.f32.gmra.mxu0 %v50
    %v1440 = vpop.f32.mrf.mxu0
    %v1441 = vadd.f32 %v1388, %v1440
    %1442 = vmatmul.f32.gmra.mxu0 %v68
    %v1443 = vpop.f32.mrf.mxu0
    %v1444 = vadd.f32 %v1391, %v1443
    %1445 = vmatmul.f32.gmra.mxu0 %v86
    %v1446 = vpop.f32.mrf.mxu0
    %v1447 = vadd.f32 %v1394, %v1446
    %1448 = vmatmul.f32.gmra.mxu0 %v104
    %v1449 = vpop.f32.mrf.mxu0
    %v1450 = vadd.f32 %v1397, %v1449
    %1451 = vmatmul.f32.gmra.mxu0 %v122
    %v1452 = vpop.f32.mrf.mxu0
    %v1453 = vadd.f32 %v1400, %v1452
    %1454 = vmatmul.f32.gmra.mxu0 %v140
    %v1455 = vpop.f32.mrf.mxu0
    %v1456 = vadd.f32 %v1403, %v1455
    %1457 = vmatmul.f32.gmra.mxu0 %v158
    %v1458 = vpop.f32.mrf.mxu0
    %v1459 = vadd.f32 %v1406, %v1458
    %1460 = vmatmul.f32.gmra.mxu0 %v176
    %v1461 = vpop.f32.mrf.mxu0
    %v1462 = vadd.f32 %v1409, %v1461
    %1463 = vmatmul.f32.gmra.mxu0 %v194
    %v1464 = vpop.f32.mrf.mxu0
    %v1465 = vadd.f32 %v1412, %v1464
    %1466 = vmatmul.f32.gmra.mxu0 %v212
    %v1467 = vpop.f32.mrf.mxu0
    %v1468 = vadd.f32 %v1415, %v1467
    %1469 = vmatmul.f32.gmra.mxu0 %v230
    %v1470 = vpop.f32.mrf.mxu0
    %v1471 = vadd.f32 %v1418, %v1470
    %1472 = vdwg.mxu0
    %vm1473 = vcmask 400384
    %v1474 = vsel %vm1473, %v1438, 0.0
    %1475 = vadd.xlane.f32.xlu0 %v1474
    %v1476 = vpop.xlane.xlu0 %1475
    %v1477 = vsel %vm1473, %v1441, 0.0
    %1478 = vadd.xlane.f32.xlu0 %v1477
    %v1479 = vpop.xlane.xlu0 %1478
    %v1480 = vsel %vm1473, %v1444, 0.0
    %1481 = vadd.xlane.f32.xlu0 %v1480
    %v1482 = vpop.xlane.xlu0 %1481
    %v1483 = vsel %vm1473, %v1447, 0.0
    %1484 = vadd.xlane.f32.xlu0 %v1483
    %v1485 = vpop.xlane.xlu0 %1484
    %v1486 = vsel %vm1473, %v1450, 0.0
    %1487 = vadd.xlane.f32.xlu0 %v1486
    %v1488 = vpop.xlane.xlu0 %1487
    %v1489 = vsel %vm1473, %v1453, 0.0
    %1490 = vadd.xlane.f32.xlu0 %v1489
    %v1491 = vpop.xlane.xlu0 %1490
    %v1492 = vsel %vm1473, %v1456, 0.0
    %1493 = vadd.xlane.f32.xlu0 %v1492
    %v1494 = vpop.xlane.xlu0 %1493
    %v1495 = vsel %vm1473, %v1459, 0.0
    %1496 = vadd.xlane.f32.xlu0 %v1495
    %v1497 = vpop.xlane.xlu0 %1496
    %v1498 = vsel %vm1473, %v1462, 0.0
    %1499 = vadd.xlane.f32.xlu0 %v1498
    %v1500 = vpop.xlane.xlu0 %1499
    %v1501 = vsel %vm1473, %v1465, 0.0
    %1502 = vadd.xlane.f32.xlu0 %v1501
    %v1503 = vpop.xlane.xlu0 %1502
    %v1504 = vsel %vm1473, %v1468, 0.0
    %1505 = vadd.xlane.f32.xlu0 %v1504
    %v1506 = vpop.xlane.xlu0 %1505
    %v1507 = vsel %vm1473, %v1471, 0.0
    %1508 = vadd.xlane.f32.xlu0 %v1507
    %v1509 = vpop.xlane.xlu0 %1508
    %v1510 = vmul.f32 %v1476, 0.020408163
    %v1511 = vmul.f32 %v1479, 0.020408163
    %v1512 = vmul.f32 %v1482, 0.020408163
    %v1513 = vmul.f32 %v1485, 0.020408163
    %v1514 = vmul.f32 %v1488, 0.020408163
    %v1515 = vmul.f32 %v1491, 0.020408163
    %v1516 = vmul.f32 %v1494, 0.020408163
    %v1517 = vmul.f32 %v1497, 0.020408163
    %v1518 = vmul.f32 %v1500, 0.020408163
    %v1519 = vmul.f32 %v1503, 0.020408163
    %v1520 = vmul.f32 %v1506, 0.020408163
    %v1521 = vmul.f32 %v1509, 0.020408163
    %v1522 = vld [vmem:[%s2] sm:$0x1]
    %v1524 = vperm.slane %v1522, 0
    %v1525 = vlaneseq
    %v1526 = vshrl.u32 %v1525, 7
    %1528 = vset.pattern.permute.xlu0 %v1526
    %1529 = vperm.xlu0 %1528, %v1524
    %v1530 = vpop.permute.xlu0 %1529
    %v1531 = vlaneseq
    %v1532 = vshrl.u32 %v1531, 7
    %v1533 = vadd.s32 %v1532, 8
    %1534 = vset.pattern.permute.xlu0 %v1533
    %1535 = vperm.xlu0 %1534, %v1524
    %v1536 = vpop.permute.xlu0 %1535
    %v1537 = vlaneseq
    %v1538 = vshrl.u32 %v1537, 7
    %v1539 = vadd.s32 %v1538, 16
    %1540 = vset.pattern.permute.xlu0 %v1539
    %1541 = vperm.xlu0 %1540, %v1524
    %v1542 = vpop.permute.xlu0 %1541
    %v1543 = vlaneseq
    %v1544 = vshrl.u32 %v1543, 7
    %v1545 = vadd.s32 %v1544, 24
    %1546 = vset.pattern.permute.xlu0 %v1545
    %1547 = vperm.xlu0 %1546, %v1524
    %v1548 = vpop.permute.xlu0 %1547
    %v1549 = vlaneseq
    %v1550 = vshrl.u32 %v1549, 7
    %v1551 = vadd.s32 %v1550, 32
    %1552 = vset.pattern.permute.xlu0 %v1551
    %1553 = vperm.xlu0 %1552, %v1524
    %v1554 = vpop.permute.xlu0 %1553
    %v1555 = vlaneseq
    %v1556 = vshrl.u32 %v1555, 7
    %v1557 = vadd.s32 %v1556, 40
    %1558 = vset.pattern.permute.xlu0 %v1557
    %1559 = vperm.xlu0 %1558, %v1524
    %v1560 = vpop.permute.xlu0 %1559
    %v1561 = vlaneseq
    %v1562 = vshrl.u32 %v1561, 7
    %v1563 = vadd.s32 %v1562, 48
    %1564 = vset.pattern.permute.xlu0 %v1563
    %1565 = vperm.xlu0 %1564, %v1524
    %v1566 = vpop.permute.xlu0 %1565
    %v1567 = vlaneseq
    %v1568 = vshrl.u32 %v1567, 7
    %v1569 = vadd.s32 %v1568, 56
    %1570 = vset.pattern.permute.xlu0 %v1569
    %1571 = vperm.xlu0 %1570, %v1524
    %v1572 = vpop.permute.xlu0 %1571
    %v1573 = vlaneseq
    %v1574 = vshrl.u32 %v1573, 7
    %v1575 = vadd.s32 %v1574, 64
    %1576 = vset.pattern.permute.xlu0 %v1575
    %1577 = vperm.xlu0 %1576, %v1524
    %v1578 = vpop.permute.xlu0 %1577
    %v1579 = vlaneseq
    %v1580 = vshrl.u32 %v1579, 7
    %v1581 = vadd.s32 %v1580, 72
    %1582 = vset.pattern.permute.xlu0 %v1581
    %1583 = vperm.xlu0 %1582, %v1524
    %v1584 = vpop.permute.xlu0 %1583
    %v1585 = vlaneseq
    %v1586 = vshrl.u32 %v1585, 7
    %v1587 = vadd.s32 %v1586, 80
    %1588 = vset.pattern.permute.xlu0 %v1587
    %1589 = vperm.xlu0 %1588, %v1524
    %v1590 = vpop.permute.xlu0 %1589
    %v1591 = vlaneseq
    %v1592 = vshrl.u32 %v1591, 7
    %v1593 = vadd.s32 %v1592, 88
    %1594 = vset.pattern.permute.xlu0 %v1593
    %1595 = vperm.xlu0 %1594, %v1524
    %v1596 = vpop.permute.xlu0 %1595
    %v1609 = vadd.f32 %v1510, %v1530
    %v1610 = vadd.f32 %v1511, %v1536
    %v1611 = vadd.f32 %v1512, %v1542
    %v1612 = vadd.f32 %v1513, %v1548
    %v1613 = vadd.f32 %v1514, %v1554
    %v1614 = vadd.f32 %v1515, %v1560
    %v1615 = vadd.f32 %v1516, %v1566
    %v1616 = vadd.f32 %v1517, %v1572
    %v1617 = vadd.f32 %v1518, %v1578
    %v1618 = vadd.f32 %v1519, %v1584
    %v1619 = vadd.f32 %v1520, %v1590
    %v1620 = vadd.f32 %v1521, %v1596
    %1633 = vset.pattern.permute.xlu0 0
    %1634 = vperm.xlu0 %1633, %v1609
    %v1635 = vpop.permute.xlu0 %1634
    %1636 = vset.pattern.permute.xlu0 0
    %1637 = vperm.xlu0 %1636, %v1610
    %v1638 = vpop.permute.xlu0 %1637
    %1639 = vset.pattern.permute.xlu0 0
    %1640 = vperm.xlu0 %1639, %v1611
    %v1641 = vpop.permute.xlu0 %1640
    %1642 = vset.pattern.permute.xlu0 0
    %1643 = vperm.xlu0 %1642, %v1612
    %v1644 = vpop.permute.xlu0 %1643
    %1645 = vset.pattern.permute.xlu0 0
    %1646 = vperm.xlu0 %1645, %v1613
    %v1647 = vpop.permute.xlu0 %1646
    %1648 = vset.pattern.permute.xlu0 0
    %1649 = vperm.xlu0 %1648, %v1614
    %v1650 = vpop.permute.xlu0 %1649
    %1651 = vset.pattern.permute.xlu0 0
    %1652 = vperm.xlu0 %1651, %v1615
    %v1653 = vpop.permute.xlu0 %1652
    %1654 = vset.pattern.permute.xlu0 0
    %1655 = vperm.xlu0 %1654, %v1616
    %v1656 = vpop.permute.xlu0 %1655
    %1657 = vset.pattern.permute.xlu0 0
    %1658 = vperm.xlu0 %1657, %v1617
    %v1659 = vpop.permute.xlu0 %1658
    %1660 = vset.pattern.permute.xlu0 0
    %1661 = vperm.xlu0 %1660, %v1618
    %v1662 = vpop.permute.xlu0 %1661
    %1663 = vset.pattern.permute.xlu0 0
    %1664 = vperm.xlu0 %1663, %v1619
    %v1665 = vpop.permute.xlu0 %1664
    %1666 = vset.pattern.permute.xlu0 0
    %1667 = vperm.xlu0 %1666, %v1620
    %v1668 = vpop.permute.xlu0 %1667
    %v1669 = vlaneseq
    %v1670 = vand.u32 %v1669, 127
    %v1671 = vperm.slane %v1635, %v1670
    %v1672 = vadd.s32 %v1670, 4294967288
    %v1673 = vperm.slane %v1638, %v1672
    %vm1674 = vcmask 130112
    %v1675 = vsel %vm1674, %v1673, %v1671
    %v1676 = vadd.s32 %v1670, 4294967280
    %v1677 = vperm.slane %v1641, %v1676
    %vm1678 = vcmask 195712
    %v1679 = vsel %vm1678, %v1677, %v1675
    %v1680 = vadd.s32 %v1670, 4294967272
    %v1681 = vperm.slane %v1644, %v1680
    %vm1682 = vcmask 261312
    %v1683 = vsel %vm1682, %v1681, %v1679
    %v1684 = vadd.s32 %v1670, 4294967264
    %v1685 = vperm.slane %v1647, %v1684
    %vm1686 = vcmask 326912
    %v1687 = vsel %vm1686, %v1685, %v1683
    %v1688 = vadd.s32 %v1670, 4294967256
    %v1689 = vperm.slane %v1650, %v1688
    %vm1690 = vcmask 392512
    %v1691 = vsel %vm1690, %v1689, %v1687
    %v1692 = vadd.s32 %v1670, 4294967248
    %v1693 = vperm.slane %v1653, %v1692
    %vm1694 = vcmask 458112
    %v1695 = vsel %vm1694, %v1693, %v1691
    %v1696 = vadd.s32 %v1670, 4294967240
    %v1697 = vperm.slane %v1656, %v1696
    %vm1698 = vcmask 523712
    %v1699 = vsel %vm1698, %v1697, %v1695
    %v1700 = vadd.s32 %v1670, 4294967232
    %v1701 = vperm.slane %v1659, %v1700
    %vm1702 = vcmask 589312
    %v1703 = vsel %vm1702, %v1701, %v1699
    %v1704 = vadd.s32 %v1670, 4294967224
    %v1705 = vperm.slane %v1662, %v1704
    %vm1706 = vcmask 654912
    %v1707 = vsel %vm1706, %v1705, %v1703
    %v1708 = vadd.s32 %v1670, 4294967216
    %v1709 = vperm.slane %v1665, %v1708
    %vm1710 = vcmask 720512
    %v1711 = vsel %vm1710, %v1709, %v1707
    %v1712 = vadd.s32 %v1670, 4294967208
    %v1713 = vperm.slane %v1668, %v1712
    %vm1714 = vcmask 786112
    %v1715 = vsel %vm1714, %v1713, %v1711
    %vm1717 = vcmask 778240
    %1718 = vst.msk [vmem:[#allocation2] sm:$0x1] %vm1717, %v1715
    // Predicated region
    $region14: #{tpu_custom_call.1} parent=1 // pred_check
      _
    $region15: #{tpu_custom_call.1} parent=1 // pred_check_branch
      %1720 = sbr.rel (0) target = $region17
    $region16: #{tpu_custom_call.1} parent=1 // pred_region
      %1722 = vsyncadd [#allocation3], 0
      %s1724 = sshll.u32 [#allocation2], 4
      %s1725 = int_to_ptr.vmem [resolvable:$true] %s1724
      %s1726 = sshll.u32 %s3, 4
      %s1727 = int_to_ptr.hbm [resolvable:$true] %s1726
      %1729 = dma.vmem_to_hbm [thread:$0]  %s1725, 16, %s1727, [#allocation3]
    $region17: #{tpu_custom_call.1} parent=1 // pred_fallthru
      _
    // Predicated region
    $region18: #{tpu_custom_call.1} parent=1 // pred_check
      _
    $region19: #{tpu_custom_call.1} parent=1 // pred_check_branch
      %1731 = sbr.rel (0) target = $region21
    $region20: #{tpu_custom_call.1} parent=1 // pred_region
      %1733 = dma.done [#allocation3], 16
    $region21: #{tpu_custom_call.1} parent=1 // pred_fallthru
      _
    %1734 = vsyncpa [#allocation3], 1

</llo_original>
